<compile_context>
chip_gen: v6e
topology: v6e:2x2x1
jax: 0.10.0
libtpu: 0.0.40
codegen_flags: <defaults>
</compile_context>

<pallas_src>
import functools

import jax
import jax.numpy as jnp
import numpy as np
from jax.experimental import pallas as pl
from jax.experimental.pallas import tpu as pltpu


def _round_up(a, m):
    return (a + m - 1) // m * m


def node_model_kernel(ts_ref, tc_ref,                                  # SMEM prefetch
                      x_ref, col_ref, ea_ref, eat_ref, batch_ref, u_ref,
                      w1x_ref, w1s_ref, w1mx_ref, w1mn_ref, w1u_ref,
                      b1_ref, w2_ref, b2_ref,
                      out_ref, ssum_acc, smax_acc,
                      *, apply_residual):
    n = pl.program_id(0)                 # node-tile index (parallel)
    e = pl.program_id(1)                 # edge-tile step within this node tile
    TN = x_ref.shape[0]
    TE = col_ref.shape[1]
    FE = eat_ref.shape[0]                # real (unpadded) edge-feature count
    f32 = jnp.float32

    # ---- init accumulators on the first edge step of each node tile ----
    @pl.when(e == 0)
    def _():
        ssum_acc[...] = jnp.zeros_like(ssum_acc)
        smax_acc[...] = jnp.full(smax_acc.shape, -jnp.inf, dtype=smax_acc.dtype)

    # ---- accumulate only over this node tile's own (sorted) edge tiles ----
    @pl.when(e < tc_ref[n])
    def _():
        node_base = n * TN
        rel = col_ref[...] - node_base                              # [1, TE]
        iota = jax.lax.broadcasted_iota(jnp.int32, (TN, TE), 0)
        mask = rel == iota                                          # [TN, TE] one-hot

        # scatter_add (+ per-node edge count via the ones column): one MXU matmul.
        ssum_acc[...] += jnp.dot(mask.astype(f32), ea_ref[...],
                                 preferred_element_type=f32)

        # scatter_max: edges on lanes, features unrolled (FE is small).
        negm = jnp.where(mask, 0.0, -jnp.inf)                       # additive mask
        eat = eat_ref[...]                                          # [FE, TE]
        CH = 128 if TE >= 128 else TE
        n_chunks = TE // CH
        for f in range(FE):
            run = negm[:, 0:CH] + eat[f:f + 1, 0:CH]                # [TN, CH]
            for c in range(1, n_chunks):
                lo = c * CH
                run = jnp.maximum(run,
                                  negm[:, lo:lo + CH] + eat[f:f + 1, lo:lo + CH])
            fmax = jnp.max(run, axis=1, keepdims=True)              # [TN, 1] (XLU)
            smax_acc[:, f:f + 1] = jnp.maximum(smax_acc[:, f:f + 1], fmax)

    # ---- finalize: u[batch] gather, split-weight MLP, residual ----
    @pl.when(e == pl.num_programs(1) - 1)
    def _():
        ssum_full = ssum_acc[...]                                   # [TN, FE+1]
        FEC = ssum_full.shape[1]
        cnt = ssum_full[:, FEC - 1:FEC]                             # [TN, 1]
        ssum = ssum_full[:, 0:FEC - 1]                              # [TN, FE]
        smean = ssum / jnp.maximum(cnt, 1.0)
        smax = jnp.where(cnt > 0.0, smax_acc[...], 0.0)             # untouched -> 0

        x = x_ref[...]                                              # [TN, node_in]
        BP = u_ref.shape[0]
        gid = jax.lax.broadcasted_iota(jnp.int32, (TN, BP), 1)
        bmask = (batch_ref[...] == gid).astype(f32)                 # [TN, BP] one-hot
        ug = jnp.dot(bmask, u_ref[...], preferred_element_type=f32)

        # concat(x, sum, max, mean, u) @ W1  ==  sum of five small-K matmuls.
        h = jnp.dot(x, w1x_ref[...], preferred_element_type=f32)
        h = h + jnp.dot(ssum, w1s_ref[...], preferred_element_type=f32)
        h = h + jnp.dot(smax, w1mx_ref[...], preferred_element_type=f32)
        h = h + jnp.dot(smean, w1mn_ref[...], preferred_element_type=f32)
        h = h + jnp.dot(ug, w1u_ref[...], preferred_element_type=f32)
        h = jnp.maximum(h + b1_ref[...], 0.0)
        out = jnp.dot(h, w2_ref[...], preferred_element_type=f32) + b2_ref[...]
        if apply_residual:
            out = out + x
        out_ref[...] = out


def node_model_forward(x, edge_index, edge_attr, u, batch, params,
                       *, residuals=True, tn=256, te=1024):
    """NodeModel forward (norm=False path).

    Host-side preprocessing (edge sort + per-node-tile edge-tile ranges) needs
    concrete inputs.  # TODO(synk): jit-friendly variant with a static worst-
    case edge-tile bound passed in.
    """
    N, node_in = x.shape
    E, edge_out = edge_attr.shape
    B, global_in = u.shape
    hidden = params["w1x"].shape[1]
    node_out = params["w2"].shape[1]
    if residuals:
        assert node_in == node_out, "residual requires node_in == node_out"

    f32 = jnp.float32
    LANE, SUB = 128, 8

    # --- node tiling: keep >= 2 node tiles when possible (v7x dual TC) ---
    TN = min(tn, _round_up(N, SUB))
    if N > SUB and _round_up(N, TN) // TN < 2:
        TN = max(SUB, _round_up((N + 1) // 2, SUB))
    NP = _round_up(N, TN)
    n_node_tiles = NP // TN

    # --- edge tiling ---
    TE = min(te, _round_up(max(E, 1), LANE))
    EP = _round_up(max(E, 1), TE)
    n_edge_tiles = EP // TE

    # --- host-side: sort edges by destination, per-node-tile edge-tile ranges ---
    col_np = np.asarray(edge_index)[1].astype(np.int32)
    order_np = np.argsort(col_np, kind="stable")
    col_sorted_np = col_np[order_np]
    bounds = np.arange(n_node_tiles + 1, dtype=np.int64) * TN
    lo = np.searchsorted(col_sorted_np, bounds[:-1], side="left")
    hi = np.searchsorted(col_sorted_np, bounds[1:], side="left")
    t_start = np.minimum(lo // TE, n_edge_tiles - 1).astype(np.int32)
    t_end = np.where(hi > lo, -(-hi // TE), lo // TE)
    t_cnt = np.maximum(t_end - t_start, 0).astype(np.int32)
    max_tiles = max(int(t_cnt.max()), 1) if t_cnt.size else 1

    ea_sorted = jnp.asarray(edge_attr, f32)[jnp.asarray(order_np)]

    # --- padded device inputs (no 128-lane feature padding anywhere) ---
    xp = jnp.zeros((NP, node_in), f32).at[:N].set(x.astype(f32))
    colp = jnp.full((1, EP), -1, jnp.int32).at[0, :E].set(jnp.asarray(col_sorted_np))
    eac = jnp.zeros((EP, edge_out + 1), f32)
    eac = eac.at[:E, :edge_out].set(ea_sorted)
    eac = eac.at[:E, edge_out].set(1.0)                          # count column
    eat = jnp.zeros((edge_out, EP), f32).at[:, :E].set(ea_sorted.T)
    batchp = jnp.zeros((NP, 1), jnp.int32).at[:N, 0].set(batch.astype(jnp.int32))
    BP = _round_up(max(B, 1), SUB)
    up = jnp.zeros((BP, global_in), f32).at[:B].set(u.astype(f32))

    w1x = jnp.asarray(params["w1x"], f32)
    w1s = jnp.asarray(params["w1s"], f32)
    w1mx = jnp.asarray(params["w1mx"], f32)
    w1mn = jnp.asarray(params["w1mn"], f32)
    w1u = jnp.asarray(params["w1u"], f32)
    b1 = jnp.asarray(params["b1"], f32).reshape(1, hidden)
    w2 = jnp.asarray(params["w2"], f32)
    b2 = jnp.asarray(params["b2"], f32).reshape(1, node_out)

    net_m1 = n_edge_tiles - 1

    def node_map(n, e, ts, tc):
        return (n, 0)

    def const_map(n, e, ts, tc):
        return (0, 0)

    def col_map(n, e, ts, tc):
        return (0, jnp.minimum(ts[n] + e, net_m1))

    def ea_map(n, e, ts, tc):
        return (jnp.minimum(ts[n] + e, net_m1), 0)

    def eat_map(n, e, ts, tc):
        return (0, jnp.minimum(ts[n] + e, net_m1))

    kernel = functools.partial(node_model_kernel, apply_residual=residuals)

    grid_spec = pltpu.PrefetchScalarGridSpec(
        num_scalar_prefetch=2,
        grid=(n_node_tiles, max_tiles),
        in_specs=[
            pl.BlockSpec((TN, node_in), node_map),          # x          (per node tile)
            pl.BlockSpec((1, TE), col_map),                 # sorted col (per edge tile)
            pl.BlockSpec((TE, edge_out + 1), ea_map),       # [edge_attr | 1]
            pl.BlockSpec((edge_out, TE), eat_map),          # edge_attr^T (edges on lanes)
            pl.BlockSpec((TN, 1), node_map),                # batch
            pl.BlockSpec((BP, global_in), const_map),       # u          (resident)
            pl.BlockSpec((node_in, hidden), const_map),     # W1_x       (resident)
            pl.BlockSpec((edge_out, hidden), const_map),    # W1_sum
            pl.BlockSpec((edge_out, hidden), const_map),    # W1_max
            pl.BlockSpec((edge_out, hidden), const_map),    # W1_mean
            pl.BlockSpec((global_in, hidden), const_map),   # W1_u
            pl.BlockSpec((1, hidden), const_map),           # b1
            pl.BlockSpec((hidden, node_out), const_map),    # W2
            pl.BlockSpec((1, node_out), const_map),         # b2
        ],
        out_specs=pl.BlockSpec((TN, node_out), node_map),
        scratch_shapes=[pltpu.VMEM((TN, edge_out + 1), f32),   # sum (+count)
                        pltpu.VMEM((TN, edge_out), f32)],      # max
    )

    out_p = pl.pallas_call(
        kernel,
        out_shape=jax.ShapeDtypeStruct((NP, node_out), f32),
        grid_spec=grid_spec,
        compiler_params=pltpu.CompilerParams(
            dimension_semantics=("parallel", "arbitrary"),
            vmem_limit_bytes=32 * 1024 * 1024),
    )(jnp.asarray(t_start), jnp.asarray(t_cnt),
      xp, colp, eac, eat, batchp, up,
      w1x, w1s, w1mx, w1mn, w1u, b1, w2, b2)

    return out_p[:N]


def reference_forward(x, edge_index, edge_attr, u, batch, params):
    """Pure-JAX reference replicating the PyTorch forward (norm=False)."""
    N = x.shape[0]
    col = edge_index[1]
    ssum = jax.ops.segment_sum(edge_attr, col, num_segments=N)
    cnt = jax.ops.segment_sum(jnp.ones((edge_attr.shape[0],), jnp.float32),
                              col, num_segments=N)[:, None]
    smean = ssum / jnp.maximum(cnt, 1.0)
    smax = jax.ops.segment_max(edge_attr, col, num_segments=N)
    smax = jnp.where(cnt > 0, smax, 0.0)
    ug = u[batch]
    feat = jnp.concatenate([x, ssum, smax, smean, ug], axis=1)
    W1 = jnp.concatenate([params["w1x"], params["w1s"], params["w1mx"],
                          params["w1mn"], params["w1u"]], axis=0)
    h = jnp.maximum(feat @ W1 + params["b1"], 0.0)
    out = h @ params["w2"] + params["b2"]
    return out + x


def _make_case(key, N, E, B, node_in, edge_out, global_in, hidden):
    k = jax.random.split(key, 10)
    x = jax.random.normal(k[0], (N, node_in), jnp.float32)
    edge_attr = jax.random.normal(k[1], (E, edge_out), jnp.float32)
    u = jax.random.normal(k[2], (B, global_in), jnp.float32)
    row = jax.random.randint(k[3], (E,), 0, N, jnp.int32)
    col = jax.random.randint(k[4], (E,), 0, N, jnp.int32)
    edge_index = jnp.stack([row, col], axis=0)
    batch = (jnp.arange(N, dtype=jnp.int32) * B) // N

    d_in1 = node_in + 3 * edge_out + global_in
    w1 = jax.random.normal(k[5], (d_in1, hidden), jnp.float32) * 0.1
    w1x, w1s, w1mx, w1mn, w1u = jnp.split(
        w1, np.cumsum([node_in, edge_out, edge_out, edge_out]).tolist(), axis=0)
    params = {
        "w1x": w1x, "w1s": w1s, "w1mx": w1mx, "w1mn": w1mn, "w1u": w1u,
        "b1": jax.random.normal(k[6], (1, hidden), jnp.float32) * 0.1,
        "w2": jax.random.normal(k[7], (hidden, node_in), jnp.float32) * 0.1,
        "b2": jax.random.normal(k[8], (1, node_in), jnp.float32) * 0.1,
    }
    return x, edge_index, edge_attr, u, batch, params


if __name__ == "__main__":
    key = jax.random.PRNGKey(0)
    k1, k2 = jax.random.split(key)

    # Case 1: small shapes (single edge tile, 2 node tiles).
    # Case 2: moderate shapes exercising multiple edge tiles per node tile,
    #         the sorted-range prefetch path and the pl.when edge-step guard.
    cases = [
        _make_case(k1, N=16, E=32, B=2, node_in=8, edge_out=8,
                   global_in=4, hidden=32),
        _make_case(k2, N=256, E=4096, B=3, node_in=8, edge_out=8,
                   global_in=4, hidden=32),
    ]

    for (x, edge_index, edge_attr, u, batch, params) in cases:
        out = node_model_forward(x, edge_index, edge_attr, u, batch, params)
        out = jax.block_until_ready(out)
        ref = reference_forward(x, edge_index, edge_attr, u, batch, params)
        assert out.shape == ref.shape
        np.testing.assert_allclose(np.asarray(out), np.asarray(ref),
                                   rtol=1e-5, atol=1e-5)

    print("KERNEL_OK")
</pallas_src>

<mosaic_0001>
module attributes {stable_mosaic.version = 11 : i64} {
  func.func @node_model_kernel(%arg0: i32, %arg1: i32, %arg2: memref<2xi32, #tpu.memory_space<smem>>, %arg3: memref<2xi32, #tpu.memory_space<smem>>, %arg4: memref<8x8xf32, #tpu.memory_space<vmem>>, %arg5: memref<1x128xi32, #tpu.memory_space<vmem>>, %arg6: memref<128x9xf32, #tpu.memory_space<vmem>>, %arg7: memref<8x128xf32, #tpu.memory_space<vmem>>, %arg8: memref<8x1xi32, #tpu.memory_space<vmem>>, %arg9: memref<8x4xf32, #tpu.memory_space<vmem>>, %arg10: memref<8x32xf32, #tpu.memory_space<vmem>>, %arg11: memref<8x32xf32, #tpu.memory_space<vmem>>, %arg12: memref<8x32xf32, #tpu.memory_space<vmem>>, %arg13: memref<8x32xf32, #tpu.memory_space<vmem>>, %arg14: memref<4x32xf32, #tpu.memory_space<vmem>>, %arg15: memref<1x32xf32, #tpu.memory_space<vmem>>, %arg16: memref<32x8xf32, #tpu.memory_space<vmem>>, %arg17: memref<1x8xf32, #tpu.memory_space<vmem>>, %arg18: memref<8x8xf32, #tpu.memory_space<vmem>>, %arg19: memref<8x9xf32, #tpu.memory_space<vmem>>, %arg20: memref<8x8xf32, #tpu.memory_space<vmem>>) attributes {dimension_semantics = [#tpu.dimension_semantics<parallel>, #tpu.dimension_semantics<arbitrary>], iteration_bounds = array<i64: 2, 1>, scalar_prefetch = 2 : i64, scratch_operands = 2 : i64, tpu.core_type = #tpu.core_type<tc>, window_params = [{transform_indices = @transform_0, window_bounds = array<i64: 8, 8>}, {transform_indices = @transform_1, window_bounds = array<i64: 1, 128>}, {transform_indices = @transform_2, window_bounds = array<i64: 128, 9>}, {transform_indices = @transform_3, window_bounds = array<i64: 8, 128>}, {transform_indices = @transform_4, window_bounds = array<i64: 8, 1>}, {pipeline_mode = #tpu.pipeline_mode<synchronous>, transform_indices = @transform_5, window_bounds = array<i64: 8, 4>}, {pipeline_mode = #tpu.pipeline_mode<synchronous>, transform_indices = @transform_6, window_bounds = array<i64: 8, 32>}, {pipeline_mode = #tpu.pipeline_mode<synchronous>, transform_indices = @transform_7, window_bounds = array<i64: 8, 32>}, {pipeline_mode = #tpu.pipeline_mode<synchronous>, transform_indices = @transform_8, window_bounds = array<i64: 8, 32>}, {pipeline_mode = #tpu.pipeline_mode<synchronous>, transform_indices = @transform_9, window_bounds = array<i64: 8, 32>}, {pipeline_mode = #tpu.pipeline_mode<synchronous>, transform_indices = @transform_10, window_bounds = array<i64: 4, 32>}, {pipeline_mode = #tpu.pipeline_mode<synchronous>, transform_indices = @transform_11, window_bounds = array<i64: 1, 32>}, {pipeline_mode = #tpu.pipeline_mode<synchronous>, transform_indices = @transform_12, window_bounds = array<i64: 32, 8>}, {pipeline_mode = #tpu.pipeline_mode<synchronous>, transform_indices = @transform_13, window_bounds = array<i64: 1, 8>}, {transform_indices = @transform_14, window_bounds = array<i64: 8, 8>}]} {
    %c0_i32 = arith.constant 0 : i32
    %0 = arith.cmpi eq, %arg1, %c0_i32 : i32
    %1 = arith.extui %0 : i1 to i32
    %c0_i32_0 = arith.constant 0 : i32
    %2 = arith.cmpi ne, %1, %c0_i32_0 : i32
    scf.if %2 {
      %cst = arith.constant 0.000000e+00 : f32
      %11 = vector.broadcast %cst : f32 to vector<8x9xf32>
      %c0 = arith.constant 0 : index
      %c0_4 = arith.constant 0 : index
      %12 = vector.load %arg19[%c0, %c0_4] : memref<8x9xf32, #tpu.memory_space<vmem>>, vector<8x9xf32>
      tpu.vector_store %arg19[%c0, %c0_4], %11 {strides = array<i32>} : memref<8x9xf32, #tpu.memory_space<vmem>>, vector<8x9xf32>,
      %cst_5 = arith.constant 0xFF800000 : f32
      %13 = vector.broadcast %cst_5 : f32 to vector<8x8xf32>
      %c0_6 = arith.constant 0 : index
      %c0_7 = arith.constant 0 : index
      %14 = vector.load %arg20[%c0_6, %c0_7] : memref<8x8xf32, #tpu.memory_space<vmem>>, vector<8x8xf32>
      tpu.vector_store %arg20[%c0_6, %c0_7], %13 {strides = array<i32>} : memref<8x8xf32, #tpu.memory_space<vmem>>, vector<8x8xf32>,
    } else {
    }
    %3 = arith.index_cast %arg0 : i32 to index
    %4 = memref.load %arg3[%3] : memref<2xi32, #tpu.memory_space<smem>>
    %5 = arith.cmpi slt, %arg1, %4 : i32
    %6 = arith.extui %5 : i1 to i32
    %c0_i32_1 = arith.constant 0 : i32
    %7 = arith.cmpi ne, %6, %c0_i32_1 : i32
    scf.if %7 {
      %c8_i32 = arith.constant 8 : i32
      %11 = arith.muli %arg0, %c8_i32 : i32
      %c0 = arith.constant 0 : index
      %c0_4 = arith.constant 0 : index
      %12 = vector.load %arg5[%c0, %c0_4] : memref<1x128xi32, #tpu.memory_space<vmem>>, vector<1x128xi32>
      %13 = vector.broadcast %11 : i32 to vector<1x128xi32>
      %14 = arith.subi %12, %13 : vector<1x128xi32>
      %15 = tpu.iota {dimensions = array<i32: 0>} : vector<8x128xi32>
      %16 = vector.broadcast %14 : vector<1x128xi32> to vector<8x128xi32>
      %17 = arith.cmpi eq, %16, %15 : vector<8x128xi32>
      %c0_5 = arith.constant 0 : index
      %c0_6 = arith.constant 0 : index
      %18 = vector.load %arg19[%c0_5, %c0_6] : memref<8x9xf32, #tpu.memory_space<vmem>>, vector<8x9xf32>
      %19 = arith.extui %17 : vector<8x128xi1> to vector<8x128xi32>
      %20 = arith.sitofp %19 : vector<8x128xi32> to vector<8x128xf32>
      %c0_7 = arith.constant 0 : index
      %c0_8 = arith.constant 0 : index
      %21 = vector.load %arg6[%c0_7, %c0_8] : memref<128x9xf32, #tpu.memory_space<vmem>>, vector<128x9xf32>
      %cst = arith.constant dense<0.000000e+00> : vector<8x9xf32>
      %22 = tpu.matmul %20, %21, %cst {dimension_numbers = #tpu.dot_dimension_numbers<[1], [0], [0], [1], [0, 0, 1, 1], [], []>} : vector<8x128xf32>, vector<128x9xf32>, vector<8x9xf32> -> vector<8x9xf32>
      %23 = arith.addf %18, %22 : vector<8x9xf32>
      %c0_9 = arith.constant 0 : index
      %c0_10 = arith.constant 0 : index
      %24 = vector.load %arg19[%c0_9, %c0_10] : memref<8x9xf32, #tpu.memory_space<vmem>>, vector<8x9xf32>
      tpu.vector_store %arg19[%c0_9, %c0_10], %23 {strides = array<i32>} : memref<8x9xf32, #tpu.memory_space<vmem>>, vector<8x9xf32>,
      %cst_11 = arith.constant 0.000000e+00 : f32
      %cst_12 = arith.constant 0xFF800000 : f32
      %25 = vector.broadcast %cst_11 : f32 to vector<8x128xf32>
      %26 = vector.broadcast %cst_12 : f32 to vector<8x128xf32>
      %27 = arith.select %17, %25, %26 : vector<8x128xi1>, vector<8x128xf32>
      %c0_13 = arith.constant 0 : index
      %c0_14 = arith.constant 0 : index
      %28 = vector.load %arg7[%c0_13, %c0_14] : memref<8x128xf32, #tpu.memory_space<vmem>>, vector<8x128xf32>
      %29 = vector.extract_strided_slice %28 {offsets = [0, 0], sizes = [1, 128], strides = [1, 1]} : vector<8x128xf32> to vector<1x128xf32>
      %30 = vector.broadcast %29 : vector<1x128xf32> to vector<8x128xf32>
      %31 = arith.addf %27, %30 : vector<8x128xf32>
      %cst_15 = arith.constant dense<0xFF800000> : vector<8xf32>
      %32 = vector.multi_reduction <maximumf>, %31, %cst_15 [1] : vector<8x128xf32> to vector<8xf32>
      %33 = vector.shape_cast %32 : vector<8xf32> to vector<8x1xf32>
      %c0_16 = arith.constant 0 : index
      %c0_17 = arith.constant 0 : index
      %34 = vector.load %arg20[%c0_16, %c0_17] : memref<8x8xf32, #tpu.memory_space<vmem>>, vector<8x1xf32>
      %35 = arith.maximumf %34, %33 : vector<8x1xf32>
      %c0_18 = arith.constant 0 : index
      %c0_19 = arith.constant 0 : index
      %36 = vector.load %arg20[%c0_18, %c0_19] : memref<8x8xf32, #tpu.memory_space<vmem>>, vector<8x1xf32>
      tpu.vector_store %arg20[%c0_18, %c0_19], %35 {strides = array<i32>} : memref<8x8xf32, #tpu.memory_space<vmem>>, vector<8x1xf32>,
      %37 = vector.extract_strided_slice %28 {offsets = [1, 0], sizes = [1, 128], strides = [1, 1]} : vector<8x128xf32> to vector<1x128xf32>
      %38 = vector.broadcast %37 : vector<1x128xf32> to vector<8x128xf32>
      %39 = arith.addf %27, %38 : vector<8x128xf32>
      %cst_20 = arith.constant dense<0xFF800000> : vector<8xf32>
      %40 = vector.multi_reduction <maximumf>, %39, %cst_20 [1] : vector<8x128xf32> to vector<8xf32>
      %41 = vector.shape_cast %40 : vector<8xf32> to vector<8x1xf32>
      %c0_21 = arith.constant 0 : index
      %c1 = arith.constant 1 : index
      %42 = vector.load %arg20[%c0_21, %c1] : memref<8x8xf32, #tpu.memory_space<vmem>>, vector<8x1xf32>
      %43 = arith.maximumf %42, %41 : vector<8x1xf32>
      %c0_22 = arith.constant 0 : index
      %c1_23 = arith.constant 1 : index
      %44 = vector.load %arg20[%c0_22, %c1_23] : memref<8x8xf32, #tpu.memory_space<vmem>>, vector<8x1xf32>
      tpu.vector_store %arg20[%c0_22, %c1_23], %43 {strides = array<i32>} : memref<8x8xf32, #tpu.memory_space<vmem>>, vector<8x1xf32>,
      %45 = vector.extract_strided_slice %28 {offsets = [2, 0], sizes = [1, 128], strides = [1, 1]} : vector<8x128xf32> to vector<1x128xf32>
      %46 = vector.broadcast %45 : vector<1x128xf32> to vector<8x128xf32>
      %47 = arith.addf %27, %46 : vector<8x128xf32>
      %cst_24 = arith.constant dense<0xFF800000> : vector<8xf32>
      %48 = vector.multi_reduction <maximumf>, %47, %cst_24 [1] : vector<8x128xf32> to vector<8xf32>
      %49 = vector.shape_cast %48 : vector<8xf32> to vector<8x1xf32>
      %c0_25 = arith.constant 0 : index
      %c2 = arith.constant 2 : index
      %50 = vector.load %arg20[%c0_25, %c2] : memref<8x8xf32, #tpu.memory_space<vmem>>, vector<8x1xf32>
      %51 = arith.maximumf %50, %49 : vector<8x1xf32>
      %c0_26 = arith.constant 0 : index
      %c2_27 = arith.constant 2 : index
      %52 = vector.load %arg20[%c0_26, %c2_27] : memref<8x8xf32, #tpu.memory_space<vmem>>, vector<8x1xf32>
      tpu.vector_store %arg20[%c0_26, %c2_27], %51 {strides = array<i32>} : memref<8x8xf32, #tpu.memory_space<vmem>>, vector<8x1xf32>,
      %53 = vector.extract_strided_slice %28 {offsets = [3, 0], sizes = [1, 128], strides = [1, 1]} : vector<8x128xf32> to vector<1x128xf32>
      %54 = vector.broadcast %53 : vector<1x128xf32> to vector<8x128xf32>
      %55 = arith.addf %27, %54 : vector<8x128xf32>
      %cst_28 = arith.constant dense<0xFF800000> : vector<8xf32>
      %56 = vector.multi_reduction <maximumf>, %55, %cst_28 [1] : vector<8x128xf32> to vector<8xf32>
      %57 = vector.shape_cast %56 : vector<8xf32> to vector<8x1xf32>
      %c0_29 = arith.constant 0 : index
      %c3 = arith.constant 3 : index
      %58 = vector.load %arg20[%c0_29, %c3] : memref<8x8xf32, #tpu.memory_space<vmem>>, vector<8x1xf32>
      %59 = arith.maximumf %58, %57 : vector<8x1xf32>
      %c0_30 = arith.constant 0 : index
      %c3_31 = arith.constant 3 : index
      %60 = vector.load %arg20[%c0_30, %c3_31] : memref<8x8xf32, #tpu.memory_space<vmem>>, vector<8x1xf32>
      tpu.vector_store %arg20[%c0_30, %c3_31], %59 {strides = array<i32>} : memref<8x8xf32, #tpu.memory_space<vmem>>, vector<8x1xf32>,
      %61 = vector.extract_strided_slice %28 {offsets = [4, 0], sizes = [1, 128], strides = [1, 1]} : vector<8x128xf32> to vector<1x128xf32>
      %62 = vector.broadcast %61 : vector<1x128xf32> to vector<8x128xf32>
      %63 = arith.addf %27, %62 : vector<8x128xf32>
      %cst_32 = arith.constant dense<0xFF800000> : vector<8xf32>
      %64 = vector.multi_reduction <maximumf>, %63, %cst_32 [1] : vector<8x128xf32> to vector<8xf32>
      %65 = vector.shape_cast %64 : vector<8xf32> to vector<8x1xf32>
      %c0_33 = arith.constant 0 : index
      %c4 = arith.constant 4 : index
      %66 = vector.load %arg20[%c0_33, %c4] : memref<8x8xf32, #tpu.memory_space<vmem>>, vector<8x1xf32>
      %67 = arith.maximumf %66, %65 : vector<8x1xf32>
      %c0_34 = arith.constant 0 : index
      %c4_35 = arith.constant 4 : index
      %68 = vector.load %arg20[%c0_34, %c4_35] : memref<8x8xf32, #tpu.memory_space<vmem>>, vector<8x1xf32>
      tpu.vector_store %arg20[%c0_34, %c4_35], %67 {strides = array<i32>} : memref<8x8xf32, #tpu.memory_space<vmem>>, vector<8x1xf32>,
      %69 = vector.extract_strided_slice %28 {offsets = [5, 0], sizes = [1, 128], strides = [1, 1]} : vector<8x128xf32> to vector<1x128xf32>
      %70 = vector.broadcast %69 : vector<1x128xf32> to vector<8x128xf32>
      %71 = arith.addf %27, %70 : vector<8x128xf32>
      %cst_36 = arith.constant dense<0xFF800000> : vector<8xf32>
      %72 = vector.multi_reduction <maximumf>, %71, %cst_36 [1] : vector<8x128xf32> to vector<8xf32>
      %73 = vector.shape_cast %72 : vector<8xf32> to vector<8x1xf32>
      %c0_37 = arith.constant 0 : index
      %c5 = arith.constant 5 : index
      %74 = vector.load %arg20[%c0_37, %c5] : memref<8x8xf32, #tpu.memory_space<vmem>>, vector<8x1xf32>
      %75 = arith.maximumf %74, %73 : vector<8x1xf32>
      %c0_38 = arith.constant 0 : index
      %c5_39 = arith.constant 5 : index
      %76 = vector.load %arg20[%c0_38, %c5_39] : memref<8x8xf32, #tpu.memory_space<vmem>>, vector<8x1xf32>
      tpu.vector_store %arg20[%c0_38, %c5_39], %75 {strides = array<i32>} : memref<8x8xf32, #tpu.memory_space<vmem>>, vector<8x1xf32>,
      %77 = vector.extract_strided_slice %28 {offsets = [6, 0], sizes = [1, 128], strides = [1, 1]} : vector<8x128xf32> to vector<1x128xf32>
      %78 = vector.broadcast %77 : vector<1x128xf32> to vector<8x128xf32>
      %79 = arith.addf %27, %78 : vector<8x128xf32>
      %cst_40 = arith.constant dense<0xFF800000> : vector<8xf32>
      %80 = vector.multi_reduction <maximumf>, %79, %cst_40 [1] : vector<8x128xf32> to vector<8xf32>
      %81 = vector.shape_cast %80 : vector<8xf32> to vector<8x1xf32>
      %c0_41 = arith.constant 0 : index
      %c6 = arith.constant 6 : index
      %82 = vector.load %arg20[%c0_41, %c6] : memref<8x8xf32, #tpu.memory_space<vmem>>, vector<8x1xf32>
      %83 = arith.maximumf %82, %81 : vector<8x1xf32>
      %c0_42 = arith.constant 0 : index
      %c6_43 = arith.constant 6 : index
      %84 = vector.load %arg20[%c0_42, %c6_43] : memref<8x8xf32, #tpu.memory_space<vmem>>, vector<8x1xf32>
      tpu.vector_store %arg20[%c0_42, %c6_43], %83 {strides = array<i32>} : memref<8x8xf32, #tpu.memory_space<vmem>>, vector<8x1xf32>,
      %85 = vector.extract_strided_slice %28 {offsets = [7, 0], sizes = [1, 128], strides = [1, 1]} : vector<8x128xf32> to vector<1x128xf32>
      %86 = vector.broadcast %85 : vector<1x128xf32> to vector<8x128xf32>
      %87 = arith.addf %27, %86 : vector<8x128xf32>
      %cst_44 = arith.constant dense<0xFF800000> : vector<8xf32>
      %88 = vector.multi_reduction <maximumf>, %87, %cst_44 [1] : vector<8x128xf32> to vector<8xf32>
      %89 = vector.shape_cast %88 : vector<8xf32> to vector<8x1xf32>
      %c0_45 = arith.constant 0 : index
      %c7 = arith.constant 7 : index
      %90 = vector.load %arg20[%c0_45, %c7] : memref<8x8xf32, #tpu.memory_space<vmem>>, vector<8x1xf32>
      %91 = arith.maximumf %90, %89 : vector<8x1xf32>
      %c0_46 = arith.constant 0 : index
      %c7_47 = arith.constant 7 : index
      %92 = vector.load %arg20[%c0_46, %c7_47] : memref<8x8xf32, #tpu.memory_space<vmem>>, vector<8x1xf32>
      tpu.vector_store %arg20[%c0_46, %c7_47], %91 {strides = array<i32>} : memref<8x8xf32, #tpu.memory_space<vmem>>, vector<8x1xf32>,
    } else {
    }
    %c0_i32_2 = arith.constant 0 : i32
    %8 = arith.cmpi eq, %arg1, %c0_i32_2 : i32
    %9 = arith.extui %8 : i1 to i32
    %c0_i32_3 = arith.constant 0 : i32
    %10 = arith.cmpi ne, %9, %c0_i32_3 : i32
    scf.if %10 {
      %c0 = arith.constant 0 : index
      %c0_4 = arith.constant 0 : index
      %11 = vector.load %arg19[%c0, %c0_4] : memref<8x9xf32, #tpu.memory_space<vmem>>, vector<8x9xf32>
      %12 = vector.extract_strided_slice %11 {offsets = [0, 8], sizes = [8, 1], strides = [1, 1]} : vector<8x9xf32> to vector<8x1xf32>
      %13 = vector.extract_strided_slice %11 {offsets = [0, 0], sizes = [8, 8], strides = [1, 1]} : vector<8x9xf32> to vector<8x8xf32>
      %cst = arith.constant 1.000000e+00 : f32
      %14 = vector.broadcast %cst : f32 to vector<8x1xf32>
      %15 = arith.maximumf %12, %14 : vector<8x1xf32>
      %16 = vector.broadcast %15 : vector<8x1xf32> to vector<8x8xf32>
      %17 = arith.divf %13, %16 : vector<8x8xf32>
      %cst_5 = arith.constant 0.000000e+00 : f32
      %18 = vector.broadcast %cst_5 : f32 to vector<8x1xf32>
      %19 = arith.cmpf ogt, %12, %18 : vector<8x1xf32>
      %c0_6 = arith.constant 0 : index
      %c0_7 = arith.constant 0 : index
      %20 = vector.load %arg20[%c0_6, %c0_7] : memref<8x8xf32, #tpu.memory_space<vmem>>, vector<8x8xf32>
      %cst_8 = arith.constant 0.000000e+00 : f32
      %21 = vector.shape_cast %19 : vector<8x1xi1> to vector<8x1xi1>
      %22 = vector.broadcast %21 : vector<8x1xi1> to vector<8x8xi1>
      %23 = vector.broadcast %cst_8 : f32 to vector<8x8xf32>
      %24 = arith.select %22, %20, %23 : vector<8x8xi1>, vector<8x8xf32>
      %c0_9 = arith.constant 0 : index
      %c0_10 = arith.constant 0 : index
      %25 = vector.load %arg4[%c0_9, %c0_10] : memref<8x8xf32, #tpu.memory_space<vmem>>, vector<8x8xf32>
      %26 = tpu.iota {dimensions = array<i32: 1>} : vector<8x8xi32>
      %c0_11 = arith.constant 0 : index
      %c0_12 = arith.constant 0 : index
      %27 = vector.load %arg8[%c0_11, %c0_12] : memref<8x1xi32, #tpu.memory_space<vmem>>, vector<8x1xi32>
      %28 = vector.broadcast %27 : vector<8x1xi32> to vector<8x8xi32>
      %29 = arith.cmpi eq, %28, %26 : vector<8x8xi32>
      %30 = arith.extui %29 : vector<8x8xi1> to vector<8x8xi32>
      %31 = arith.sitofp %30 : vector<8x8xi32> to vector<8x8xf32>
      %c0_13 = arith.constant 0 : index
      %c0_14 = arith.constant 0 : index
      %32 = vector.load %arg9[%c0_13, %c0_14] : memref<8x4xf32, #tpu.memory_space<vmem>>, vector<8x4xf32>
      %cst_15 = arith.constant dense<0.000000e+00> : vector<8x4xf32>
      %33 = tpu.matmul %31, %32, %cst_15 {dimension_numbers = #tpu.dot_dimension_numbers<[1], [0], [0], [1], [0, 0, 1, 1], [], []>} : vector<8x8xf32>, vector<8x4xf32>, vector<8x4xf32> -> vector<8x4xf32>
      %c0_16 = arith.constant 0 : index
      %c0_17 = arith.constant 0 : index
      %34 = vector.load %arg10[%c0_16, %c0_17] : memref<8x32xf32, #tpu.memory_space<vmem>>, vector<8x32xf32>
      %cst_18 = arith.constant dense<0.000000e+00> : vector<8x32xf32>
      %35 = tpu.matmul %25, %34, %cst_18 {dimension_numbers = #tpu.dot_dimension_numbers<[1], [0], [0], [1], [0, 0, 1, 1], [], []>} : vector<8x8xf32>, vector<8x32xf32>, vector<8x32xf32> -> vector<8x32xf32>
      %c0_19 = arith.constant 0 : index
      %c0_20 = arith.constant 0 : index
      %36 = vector.load %arg11[%c0_19, %c0_20] : memref<8x32xf32, #tpu.memory_space<vmem>>, vector<8x32xf32>
      %cst_21 = arith.constant dense<0.000000e+00> : vector<8x32xf32>
      %37 = tpu.matmul %13, %36, %cst_21 {dimension_numbers = #tpu.dot_dimension_numbers<[1], [0], [0], [1], [0, 0, 1, 1], [], []>} : vector<8x8xf32>, vector<8x32xf32>, vector<8x32xf32> -> vector<8x32xf32>
      %38 = arith.addf %35, %37 : vector<8x32xf32>
      %c0_22 = arith.constant 0 : index
      %c0_23 = arith.constant 0 : index
      %39 = vector.load %arg12[%c0_22, %c0_23] : memref<8x32xf32, #tpu.memory_space<vmem>>, vector<8x32xf32>
      %cst_24 = arith.constant dense<0.000000e+00> : vector<8x32xf32>
      %40 = tpu.matmul %24, %39, %cst_24 {dimension_numbers = #tpu.dot_dimension_numbers<[1], [0], [0], [1], [0, 0, 1, 1], [], []>} : vector<8x8xf32>, vector<8x32xf32>, vector<8x32xf32> -> vector<8x32xf32>
      %41 = arith.addf %38, %40 : vector<8x32xf32>
      %c0_25 = arith.constant 0 : index
      %c0_26 = arith.constant 0 : index
      %42 = vector.load %arg13[%c0_25, %c0_26] : memref<8x32xf32, #tpu.memory_space<vmem>>, vector<8x32xf32>
      %cst_27 = arith.constant dense<0.000000e+00> : vector<8x32xf32>
      %43 = tpu.matmul %17, %42, %cst_27 {dimension_numbers = #tpu.dot_dimension_numbers<[1], [0], [0], [1], [0, 0, 1, 1], [], []>} : vector<8x8xf32>, vector<8x32xf32>, vector<8x32xf32> -> vector<8x32xf32>
      %44 = arith.addf %41, %43 : vector<8x32xf32>
      %c0_28 = arith.constant 0 : index
      %c0_29 = arith.constant 0 : index
      %45 = vector.load %arg14[%c0_28, %c0_29] : memref<4x32xf32, #tpu.memory_space<vmem>>, vector<4x32xf32>
      %cst_30 = arith.constant dense<0.000000e+00> : vector<8x32xf32>
      %46 = tpu.matmul %33, %45, %cst_30 {dimension_numbers = #tpu.dot_dimension_numbers<[1], [0], [0], [1], [0, 0, 1, 1], [], []>} : vector<8x4xf32>, vector<4x32xf32>, vector<8x32xf32> -> vector<8x32xf32>
      %47 = arith.addf %44, %46 : vector<8x32xf32>
      %c0_31 = arith.constant 0 : index
      %c0_32 = arith.constant 0 : index
      %48 = vector.load %arg15[%c0_31, %c0_32] : memref<1x32xf32, #tpu.memory_space<vmem>>, vector<1x32xf32>
      %49 = vector.broadcast %48 : vector<1x32xf32> to vector<8x32xf32>
      %50 = arith.addf %47, %49 : vector<8x32xf32>
      %cst_33 = arith.constant 0.000000e+00 : f32
      %51 = vector.broadcast %cst_33 : f32 to vector<8x32xf32>
      %52 = arith.maximumf %50, %51 : vector<8x32xf32>
      %c0_34 = arith.constant 0 : index
      %c0_35 = arith.constant 0 : index
      %53 = vector.load %arg16[%c0_34, %c0_35] : memref<32x8xf32, #tpu.memory_space<vmem>>, vector<32x8xf32>
      %cst_36 = arith.constant dense<0.000000e+00> : vector<8x8xf32>
      %54 = tpu.matmul %52, %53, %cst_36 {dimension_numbers = #tpu.dot_dimension_numbers<[1], [0], [0], [1], [0, 0, 1, 1], [], []>} : vector<8x32xf32>, vector<32x8xf32>, vector<8x8xf32> -> vector<8x8xf32>
      %c0_37 = arith.constant 0 : index
      %c0_38 = arith.constant 0 : index
      %55 = vector.load %arg17[%c0_37, %c0_38] : memref<1x8xf32, #tpu.memory_space<vmem>>, vector<1x8xf32>
      %56 = vector.broadcast %55 : vector<1x8xf32> to vector<8x8xf32>
      %57 = arith.addf %54, %56 : vector<8x8xf32>
      %58 = arith.addf %57, %25 : vector<8x8xf32>
      %c0_39 = arith.constant 0 : index
      %c0_40 = arith.constant 0 : index
      %59 = vector.load %arg18[%c0_39, %c0_40] : memref<8x8xf32, #tpu.memory_space<vmem>>, vector<8x8xf32>
      tpu.vector_store %arg18[%c0_39, %c0_40], %58 {strides = array<i32>} : memref<8x8xf32, #tpu.memory_space<vmem>>, vector<8x8xf32>,
    } else {
    }
    return
  }
  func.func @transform_0(%arg0: i32, %arg1: i32, %arg2: memref<2xi32, #tpu.memory_space<smem>>, %arg3: memref<2xi32, #tpu.memory_space<smem>>) -> (i32, i32) {
    %c0_i32 = arith.constant 0 : i32
    %c0_i32_0 = arith.constant 0 : i32
    return %arg0, %c0_i32 : i32, i32
  }
  func.func @transform_1(%arg0: i32, %arg1: i32, %arg2: memref<2xi32, #tpu.memory_space<smem>>, %arg3: memref<2xi32, #tpu.memory_space<smem>>) -> (i32, i32) {
    %0 = arith.index_cast %arg0 : i32 to index
    %1 = memref.load %arg2[%0] : memref<2xi32, #tpu.memory_space<smem>>
    %2 = arith.addi %1, %arg1 : i32
    %c0_i32 = arith.constant 0 : i32
    %3 = arith.minsi %2, %c0_i32 : i32
    %c0_i32_0 = arith.constant 0 : i32
    %c0_i32_1 = arith.constant 0 : i32
    return %c0_i32_0, %3 : i32, i32
  }
  func.func @transform_2(%arg0: i32, %arg1: i32, %arg2: memref<2xi32, #tpu.memory_space<smem>>, %arg3: memref<2xi32, #tpu.memory_space<smem>>) -> (i32, i32) {
    %0 = arith.index_cast %arg0 : i32 to index
    %1 = memref.load %arg2[%0] : memref<2xi32, #tpu.memory_space<smem>>
    %2 = arith.addi %1, %arg1 : i32
    %c0_i32 = arith.constant 0 : i32
    %3 = arith.minsi %2, %c0_i32 : i32
    %c0_i32_0 = arith.constant 0 : i32
    %c0_i32_1 = arith.constant 0 : i32
    return %3, %c0_i32_0 : i32, i32
  }
  func.func @transform_3(%arg0: i32, %arg1: i32, %arg2: memref<2xi32, #tpu.memory_space<smem>>, %arg3: memref<2xi32, #tpu.memory_space<smem>>) -> (i32, i32) {
    %0 = arith.index_cast %arg0 : i32 to index
    %1 = memref.load %arg2[%0] : memref<2xi32, #tpu.memory_space<smem>>
    %2 = arith.addi %1, %arg1 : i32
    %c0_i32 = arith.constant 0 : i32
    %3 = arith.minsi %2, %c0_i32 : i32
    %c0_i32_0 = arith.constant 0 : i32
    %c0_i32_1 = arith.constant 0 : i32
    return %c0_i32_0, %3 : i32, i32
  }
  func.func @transform_4(%arg0: i32, %arg1: i32, %arg2: memref<2xi32, #tpu.memory_space<smem>>, %arg3: memref<2xi32, #tpu.memory_space<smem>>) -> (i32, i32) {
    %c0_i32 = arith.constant 0 : i32
    %c0_i32_0 = arith.constant 0 : i32
    return %arg0, %c0_i32 : i32, i32
  }
  func.func @transform_5(%arg0: i32, %arg1: i32, %arg2: memref<2xi32, #tpu.memory_space<smem>>, %arg3: memref<2xi32, #tpu.memory_space<smem>>) -> (i32, i32) {
    %c0_i32 = arith.constant 0 : i32
    %c0_i32_0 = arith.constant 0 : i32
    %c0_i32_1 = arith.constant 0 : i32
    return %c0_i32, %c0_i32_0 : i32, i32
  }
  func.func @transform_6(%arg0: i32, %arg1: i32, %arg2: memref<2xi32, #tpu.memory_space<smem>>, %arg3: memref<2xi32, #tpu.memory_space<smem>>) -> (i32, i32) {
    %c0_i32 = arith.constant 0 : i32
    %c0_i32_0 = arith.constant 0 : i32
    %c0_i32_1 = arith.constant 0 : i32
    return %c0_i32, %c0_i32_0 : i32, i32
  }
  func.func @transform_7(%arg0: i32, %arg1: i32, %arg2: memref<2xi32, #tpu.memory_space<smem>>, %arg3: memref<2xi32, #tpu.memory_space<smem>>) -> (i32, i32) {
    %c0_i32 = arith.constant 0 : i32
    %c0_i32_0 = arith.constant 0 : i32
    %c0_i32_1 = arith.constant 0 : i32
    return %c0_i32, %c0_i32_0 : i32, i32
  }
  func.func @transform_8(%arg0: i32, %arg1: i32, %arg2: memref<2xi32, #tpu.memory_space<smem>>, %arg3: memref<2xi32, #tpu.memory_space<smem>>) -> (i32, i32) {
    %c0_i32 = arith.constant 0 : i32
    %c0_i32_0 = arith.constant 0 : i32
    %c0_i32_1 = arith.constant 0 : i32
    return %c0_i32, %c0_i32_0 : i32, i32
  }
  func.func @transform_9(%arg0: i32, %arg1: i32, %arg2: memref<2xi32, #tpu.memory_space<smem>>, %arg3: memref<2xi32, #tpu.memory_space<smem>>) -> (i32, i32) {
    %c0_i32 = arith.constant 0 : i32
    %c0_i32_0 = arith.constant 0 : i32
    %c0_i32_1 = arith.constant 0 : i32
    return %c0_i32, %c0_i32_0 : i32, i32
  }
  func.func @transform_10(%arg0: i32, %arg1: i32, %arg2: memref<2xi32, #tpu.memory_space<smem>>, %arg3: memref<2xi32, #tpu.memory_space<smem>>) -> (i32, i32) {
    %c0_i32 = arith.constant 0 : i32
    %c0_i32_0 = arith.constant 0 : i32
    %c0_i32_1 = arith.constant 0 : i32
    return %c0_i32, %c0_i32_0 : i32, i32
  }
  func.func @transform_11(%arg0: i32, %arg1: i32, %arg2: memref<2xi32, #tpu.memory_space<smem>>, %arg3: memref<2xi32, #tpu.memory_space<smem>>) -> (i32, i32) {
    %c0_i32 = arith.constant 0 : i32
    %c0_i32_0 = arith.constant 0 : i32
    %c0_i32_1 = arith.constant 0 : i32
    return %c0_i32, %c0_i32_0 : i32, i32
  }
  func.func @transform_12(%arg0: i32, %arg1: i32, %arg2: memref<2xi32, #tpu.memory_space<smem>>, %arg3: memref<2xi32, #tpu.memory_space<smem>>) -> (i32, i32) {
    %c0_i32 = arith.constant 0 : i32
    %c0_i32_0 = arith.constant 0 : i32
    %c0_i32_1 = arith.constant 0 : i32
    return %c0_i32, %c0_i32_0 : i32, i32
  }
  func.func @transform_13(%arg0: i32, %arg1: i32, %arg2: memref<2xi32, #tpu.memory_space<smem>>, %arg3: memref<2xi32, #tpu.memory_space<smem>>) -> (i32, i32) {
    %c0_i32 = arith.constant 0 : i32
    %c0_i32_0 = arith.constant 0 : i32
    %c0_i32_1 = arith.constant 0 : i32
    return %c0_i32, %c0_i32_0 : i32, i32
  }
  func.func @transform_14(%arg0: i32, %arg1: i32, %arg2: memref<2xi32, #tpu.memory_space<smem>>, %arg3: memref<2xi32, #tpu.memory_space<smem>>) -> (i32, i32) {
    %c0_i32 = arith.constant 0 : i32
    %c0_i32_0 = arith.constant 0 : i32
    return %arg0, %c0_i32 : i32, i32
  }
}

</mosaic_0001>

<llo_original>
// kernel: tpu_custom_call.1
$region0: #{tpu_custom_call.1}
  #allocation0 [shape = 'u32[]', space=smem, size = 0x4, offset = 0x4, fixed_abs, tag = 'smem constant byte address 0x4 - core index']
  #allocation1 [shape = 'u32[144,128]{1,0:T(1,128)}', space=vmem, size = 0x12000, scoped, tag = 'internal scratch']
  #allocation2 [shape = 'f32[8,9]{1,0:T(8,128)}', space=vmem, size = 0x1000, scoped, tag = 'scratch operand']
  #allocation3 [shape = 'f32[8,8]{1,0:T(8,128)}', space=vmem, size = 0x1000, scoped, tag = 'scratch operand']
  #allocation4 [shape = 's32[1]{0}', space=sflag, size = 0x4, scoped, tag = 'scoped memory for tpu_custom_call.1']
  #allocation5 [shape = 'u8[512]{0}', space=smem, size = 0x200, scoped, tag = 'prefetched SMEM operand 0']
  #allocation6 [shape = 'u8[512]{0}', space=smem, size = 0x200, scoped, tag = 'prefetched SMEM operand 1']
  %s0 = inlined_call_operand.vmem [shape: s32[2], index: 0, kind: input, shape index: {}]
  %s1 = inlined_call_operand.vmem [shape: s32[2], index: 1, kind: input, shape index: {}]
  %s2 = inlined_call_operand.vmem [shape: f32[16,8], index: 2, kind: input, shape index: {}]
  %s3 = inlined_call_operand.vmem [shape: s32[1,128], index: 3, kind: input, shape index: {}]
  %s4 = inlined_call_operand.vmem [shape: f32[128,9], index: 4, kind: input, shape index: {}]
  %s5 = inlined_call_operand.vmem [shape: f32[8,128], index: 5, kind: input, shape index: {}]
  %s6 = inlined_call_operand.vmem [shape: s32[16,1], index: 6, kind: input, shape index: {}]
  %s7 = inlined_call_operand.vmem [shape: f32[8,4], index: 7, kind: input, shape index: {}]
  %s8 = inlined_call_operand.vmem [shape: f32[8,32], index: 8, kind: input, shape index: {}]
  %s9 = inlined_call_operand.vmem [shape: f32[8,32], index: 9, kind: input, shape index: {}]
  %s10 = inlined_call_operand.vmem [shape: f32[8,32], index: 10, kind: input, shape index: {}]
  %s11 = inlined_call_operand.vmem [shape: f32[8,32], index: 11, kind: input, shape index: {}]
  %s12 = inlined_call_operand.vmem [shape: f32[4,32], index: 12, kind: input, shape index: {}]
  %s13 = inlined_call_operand.vmem [shape: f32[1,32], index: 13, kind: input, shape index: {}]
  %s14 = inlined_call_operand.vmem [shape: f32[32,8], index: 14, kind: input, shape index: {}]
  %s15 = inlined_call_operand.vmem [shape: f32[1,8], index: 15, kind: input, shape index: {}]
  %s16 = inlined_call_operand.vmem [shape: f32[16,8], index: 16, kind: output, shape index: {}]
  %s17 = sld [smem:[#allocation0]]
  $region101: #{tpu_custom_call.1} parent=0
    _
  %s19 = ssub.s32 1, %s17
  %s20 = scalar_select 0, %s19, %s17
  %s21 = sshll.u32 %s0, 4
  %s22 = int_to_ptr.vmem [resolvable:$true] %s21
  %24 = dma.vmem_to_smem %s22, 16, [#allocation5], [#allocation4]
  %s25 = sshll.u32 %s1, 4
  %s26 = int_to_ptr.vmem [resolvable:$true] %s25
  %28 = dma.vmem_to_smem %s26, 16, [#allocation6], [#allocation4]
  %29 = dma.done [#allocation4], 32
  %30 = sfence
  loop: start=0, step=1, limit=4
  $region2: #{tpu_custom_call.1} parent=0 // loop_pre_header
    _
  $region3: #{tpu_custom_call.1} parent=0 // loop_header
    %s32 = sphi 0, %s36
    %p33 = scmp.ge.s32.totalorder %s32, 4
    %s39 = sphi 0, %s51
    %s40 = sphi 0, %s47
    %s41 = sphi 0, %s39
    %s42 = sphi 0, %s40
    %s43 = sphi 0, %s41
    %s44 = sphi 0, %s42
    %s54 = sphi 0, %s56
    %s57 = sphi 0, %s54
    %s58 = sphi 0, %s57
    %s74 = sphi 0, %s58
    %s88 = sphi 0, %s90
    %s91 = sphi 0, %s88
    %s92 = sphi 0, %s91
    %s108 = sphi 0, %s92
    %s122 = sphi 0, %s124
    %s125 = sphi 0, %s122
    %s126 = sphi 0, %s125
    %s142 = sphi 0, %s126
    %s156 = sphi 0, %s158
    %s159 = sphi 0, %s156
    %s160 = sphi 0, %s159
    %s176 = sphi 0, %s160
    %s182 = sphi 0, %s184
    %s185 = sphi 0, %s182
    %s186 = sphi 0, %s185
    %s202 = sphi 0, %s186
    %s206 = sphi 0, %s206
    %s208 = sphi 0, %s206
    %s209 = sphi 0, %s208
    %s223 = sphi 0, %s209
    %s227 = sphi 0, %s227
    %s229 = sphi 0, %s227
    %s230 = sphi 0, %s229
    %s244 = sphi 0, %s230
    %s248 = sphi 0, %s248
    %s250 = sphi 0, %s248
    %s251 = sphi 0, %s250
    %s265 = sphi 0, %s251
    %s269 = sphi 0, %s269
    %s271 = sphi 0, %s269
    %s272 = sphi 0, %s271
    %s286 = sphi 0, %s272
    %s290 = sphi 0, %s290
    %s292 = sphi 0, %s290
    %s293 = sphi 0, %s292
    %s307 = sphi 0, %s293
    %s311 = sphi 0, %s311
    %s313 = sphi 0, %s311
    %s314 = sphi 0, %s313
    %s328 = sphi 0, %s314
    %s332 = sphi 0, %s332
    %s334 = sphi 0, %s332
    %s335 = sphi 0, %s334
    %s349 = sphi 0, %s335
    %s353 = sphi 0, %s353
    %s355 = sphi 0, %s353
    %s356 = sphi 0, %s355
    %s370 = sphi 0, %s356
    %s374 = sphi 0, %s374
    %s376 = sphi 0, %s374
    %s377 = sphi 0, %s376
    %s391 = sphi 0, %s377
    %s397 = sphi 0, %s399
    %s400 = sphi 0, %s397
    %s401 = sphi 0, %s400
    %s417 = sphi 0, %s401
  $region4: #{tpu_custom_call.1} parent=0 // loop_header_branch
    %35 = sbr.rel (%p33) target = $region8
  $region5: #{tpu_custom_call.1} parent=0 // loop_body
    %s37 = ssub.s32 %s32, 1
    %s38 = ssub.s32 %s32, 2
    %s45 = sadd.s32 1, %s40
    %p46 = scmp.ge.s32.totalorder %s45, 1
    %s47 = scalar_select %p46, 0, %s45
    %s48 = sadd.s32 1, %s39
    %s49 = scalar_select %p46, %s48, %s39
    %p50 = scmp.ge.s32.totalorder %s49, 2
    %s51 = scalar_select %p50, 0, %s49
    %s52 = ssub.s32 %s39, %s51
    %p53 = scmp.eq.s32.totalorder %s52, 0
    %s55 = sadd.s32 %s54, 1
    %s56 = scalar_select %p53, %s54, %s55
    %p59 = pneg %p53
    %p60 = scmp.eq.s32.totalorder %s32, 1
    %p61 = por %p59, %p60
    %p62 = scmp.ne.s32.totalorder %s54, %s57
    %p63 = scmp.eq.s32.totalorder %s32, 0
    %p64 = por %p62, %p63
    %p65 = scmp.ne.s32.totalorder %s54, %s57
    %p66 = scmp.eq.s32.totalorder %s37, 1
    %p67 = por %p65, %p66
    %p68 = scmp.ne.s32.totalorder %s57, %s58
    %p69 = scmp.eq.s32.totalorder %s37, 0
    %p70 = por %p68, %p69
    %p71 = scmp.ne.s32.totalorder %s57, %s58
    %p72 = scmp.eq.s32.totalorder %s38, 1
    %p73 = por %p71, %p72
    %p75 = scmp.ne.s32.totalorder %s58, %s74
    %p76 = scmp.eq.s32.totalorder %s38, 0
    %p77 = por %p75, %p76
    %s78 = sld [smem:[#allocation5 + %s39]]
    %s79 = sadd.s32 %s78, %s40
    %p80 = scmp.lt.s32.totalorder %s79, 0
    %s81 = scalar_select %p80, %s79, 0
    %s82 = sld [smem:[#allocation5 + %s51]]
    %s83 = sadd.s32 %s82, %s47
    %p84 = scmp.lt.s32.totalorder %s83, 0
    %s85 = scalar_select %p84, %s83, 0
    %s86 = ssub.s32 %s81, %s85
    %p87 = scmp.eq.s32.totalorder %s86, 0
    %s89 = sadd.s32 %s88, 1
    %s90 = scalar_select %p87, %s88, %s89
    %p93 = pneg %p87
    %p94 = scmp.eq.s32.totalorder %s32, 1
    %p95 = por %p93, %p94
    %p96 = scmp.ne.s32.totalorder %s88, %s91
    %p97 = scmp.eq.s32.totalorder %s32, 0
    %p98 = por %p96, %p97
    %p99 = scmp.ne.s32.totalorder %s88, %s91
    %p100 = scmp.eq.s32.totalorder %s37, 1
    %p101 = por %p99, %p100
    %p102 = scmp.ne.s32.totalorder %s91, %s92
    %p103 = scmp.eq.s32.totalorder %s37, 0
    %p104 = por %p102, %p103
    %p105 = scmp.ne.s32.totalorder %s91, %s92
    %p106 = scmp.eq.s32.totalorder %s38, 1
    %p107 = por %p105, %p106
    %p109 = scmp.ne.s32.totalorder %s92, %s108
    %p110 = scmp.eq.s32.totalorder %s38, 0
    %p111 = por %p109, %p110
    %s112 = sld [smem:[#allocation5 + %s39]]
    %s113 = sadd.s32 %s112, %s40
    %p114 = scmp.lt.s32.totalorder %s113, 0
    %s115 = scalar_select %p114, %s113, 0
    %s116 = sld [smem:[#allocation5 + %s51]]
    %s117 = sadd.s32 %s116, %s47
    %p118 = scmp.lt.s32.totalorder %s117, 0
    %s119 = scalar_select %p118, %s117, 0
    %s120 = ssub.s32 %s115, %s119
    %p121 = scmp.eq.s32.totalorder %s120, 0
    %s123 = sadd.s32 %s122, 1
    %s124 = scalar_select %p121, %s122, %s123
    %p127 = pneg %p121
    %p128 = scmp.eq.s32.totalorder %s32, 1
    %p129 = por %p127, %p128
    %p130 = scmp.ne.s32.totalorder %s122, %s125
    %p131 = scmp.eq.s32.totalorder %s32, 0
    %p132 = por %p130, %p131
    %p133 = scmp.ne.s32.totalorder %s122, %s125
    %p134 = scmp.eq.s32.totalorder %s37, 1
    %p135 = por %p133, %p134
    %p136 = scmp.ne.s32.totalorder %s125, %s126
    %p137 = scmp.eq.s32.totalorder %s37, 0
    %p138 = por %p136, %p137
    %p139 = scmp.ne.s32.totalorder %s125, %s126
    %p140 = scmp.eq.s32.totalorder %s38, 1
    %p141 = por %p139, %p140
    %p143 = scmp.ne.s32.totalorder %s126, %s142
    %p144 = scmp.eq.s32.totalorder %s38, 0
    %p145 = por %p143, %p144
    %s146 = sld [smem:[#allocation5 + %s39]]
    %s147 = sadd.s32 %s146, %s40
    %p148 = scmp.lt.s32.totalorder %s147, 0
    %s149 = scalar_select %p148, %s147, 0
    %s150 = sld [smem:[#allocation5 + %s51]]
    %s151 = sadd.s32 %s150, %s47
    %p152 = scmp.lt.s32.totalorder %s151, 0
    %s153 = scalar_select %p152, %s151, 0
    %s154 = ssub.s32 %s149, %s153
    %p155 = scmp.eq.s32.totalorder %s154, 0
    %s157 = sadd.s32 %s156, 1
    %s158 = scalar_select %p155, %s156, %s157
    %p161 = pneg %p155
    %p162 = scmp.eq.s32.totalorder %s32, 1
    %p163 = por %p161, %p162
    %p164 = scmp.ne.s32.totalorder %s156, %s159
    %p165 = scmp.eq.s32.totalorder %s32, 0
    %p166 = por %p164, %p165
    %p167 = scmp.ne.s32.totalorder %s156, %s159
    %p168 = scmp.eq.s32.totalorder %s37, 1
    %p169 = por %p167, %p168
    %p170 = scmp.ne.s32.totalorder %s159, %s160
    %p171 = scmp.eq.s32.totalorder %s37, 0
    %p172 = por %p170, %p171
    %p173 = scmp.ne.s32.totalorder %s159, %s160
    %p174 = scmp.eq.s32.totalorder %s38, 1
    %p175 = por %p173, %p174
    %p177 = scmp.ne.s32.totalorder %s160, %s176
    %p178 = scmp.eq.s32.totalorder %s38, 0
    %p179 = por %p177, %p178
    %s180 = ssub.s32 %s39, %s51
    %p181 = scmp.eq.s32.totalorder %s180, 0
    %s183 = sadd.s32 %s182, 1
    %s184 = scalar_select %p181, %s182, %s183
    %p187 = pneg %p181
    %p188 = scmp.eq.s32.totalorder %s32, 1
    %p189 = por %p187, %p188
    %p190 = scmp.ne.s32.totalorder %s182, %s185
    %p191 = scmp.eq.s32.totalorder %s32, 0
    %p192 = por %p190, %p191
    %p193 = scmp.ne.s32.totalorder %s182, %s185
    %p194 = scmp.eq.s32.totalorder %s37, 1
    %p195 = por %p193, %p194
    %p196 = scmp.ne.s32.totalorder %s185, %s186
    %p197 = scmp.eq.s32.totalorder %s37, 0
    %p198 = por %p196, %p197
    %p199 = scmp.ne.s32.totalorder %s185, %s186
    %p200 = scmp.eq.s32.totalorder %s38, 1
    %p201 = por %p199, %p200
    %p203 = scmp.ne.s32.totalorder %s186, %s202
    %p204 = scmp.eq.s32.totalorder %s38, 0
    %p205 = por %p203, %p204
    %s207 = sadd.s32 %s206, 1
    %p210 = scmp.eq.s32.totalorder %s32, 1
    %p211 = scmp.ne.s32.totalorder %s206, %s208
    %p212 = scmp.eq.s32.totalorder %s32, 0
    %p213 = por %p211, %p212
    %p214 = scmp.ne.s32.totalorder %s206, %s208
    %p215 = scmp.eq.s32.totalorder %s37, 1
    %p216 = por %p214, %p215
    %p217 = scmp.ne.s32.totalorder %s208, %s209
    %p218 = scmp.eq.s32.totalorder %s37, 0
    %p219 = por %p217, %p218
    %p220 = scmp.ne.s32.totalorder %s208, %s209
    %p221 = scmp.eq.s32.totalorder %s38, 1
    %p222 = por %p220, %p221
    %p224 = scmp.ne.s32.totalorder %s209, %s223
    %p225 = scmp.eq.s32.totalorder %s38, 0
    %p226 = por %p224, %p225
    %s228 = sadd.s32 %s227, 1
    %p231 = scmp.eq.s32.totalorder %s32, 1
    %p232 = scmp.ne.s32.totalorder %s227, %s229
    %p233 = scmp.eq.s32.totalorder %s32, 0
    %p234 = por %p232, %p233
    %p235 = scmp.ne.s32.totalorder %s227, %s229
    %p236 = scmp.eq.s32.totalorder %s37, 1
    %p237 = por %p235, %p236
    %p238 = scmp.ne.s32.totalorder %s229, %s230
    %p239 = scmp.eq.s32.totalorder %s37, 0
    %p240 = por %p238, %p239
    %p241 = scmp.ne.s32.totalorder %s229, %s230
    %p242 = scmp.eq.s32.totalorder %s38, 1
    %p243 = por %p241, %p242
    %p245 = scmp.ne.s32.totalorder %s230, %s244
    %p246 = scmp.eq.s32.totalorder %s38, 0
    %p247 = por %p245, %p246
    %s249 = sadd.s32 %s248, 1
    %p252 = scmp.eq.s32.totalorder %s32, 1
    %p253 = scmp.ne.s32.totalorder %s248, %s250
    %p254 = scmp.eq.s32.totalorder %s32, 0
    %p255 = por %p253, %p254
    %p256 = scmp.ne.s32.totalorder %s248, %s250
    %p257 = scmp.eq.s32.totalorder %s37, 1
    %p258 = por %p256, %p257
    %p259 = scmp.ne.s32.totalorder %s250, %s251
    %p260 = scmp.eq.s32.totalorder %s37, 0
    %p261 = por %p259, %p260
    %p262 = scmp.ne.s32.totalorder %s250, %s251
    %p263 = scmp.eq.s32.totalorder %s38, 1
    %p264 = por %p262, %p263
    %p266 = scmp.ne.s32.totalorder %s251, %s265
    %p267 = scmp.eq.s32.totalorder %s38, 0
    %p268 = por %p266, %p267
    %s270 = sadd.s32 %s269, 1
    %p273 = scmp.eq.s32.totalorder %s32, 1
    %p274 = scmp.ne.s32.totalorder %s269, %s271
    %p275 = scmp.eq.s32.totalorder %s32, 0
    %p276 = por %p274, %p275
    %p277 = scmp.ne.s32.totalorder %s269, %s271
    %p278 = scmp.eq.s32.totalorder %s37, 1
    %p279 = por %p277, %p278
    %p280 = scmp.ne.s32.totalorder %s271, %s272
    %p281 = scmp.eq.s32.totalorder %s37, 0
    %p282 = por %p280, %p281
    %p283 = scmp.ne.s32.totalorder %s271, %s272
    %p284 = scmp.eq.s32.totalorder %s38, 1
    %p285 = por %p283, %p284
    %p287 = scmp.ne.s32.totalorder %s272, %s286
    %p288 = scmp.eq.s32.totalorder %s38, 0
    %p289 = por %p287, %p288
    %s291 = sadd.s32 %s290, 1
    %p294 = scmp.eq.s32.totalorder %s32, 1
    %p295 = scmp.ne.s32.totalorder %s290, %s292
    %p296 = scmp.eq.s32.totalorder %s32, 0
    %p297 = por %p295, %p296
    %p298 = scmp.ne.s32.totalorder %s290, %s292
    %p299 = scmp.eq.s32.totalorder %s37, 1
    %p300 = por %p298, %p299
    %p301 = scmp.ne.s32.totalorder %s292, %s293
    %p302 = scmp.eq.s32.totalorder %s37, 0
    %p303 = por %p301, %p302
    %p304 = scmp.ne.s32.totalorder %s292, %s293
    %p305 = scmp.eq.s32.totalorder %s38, 1
    %p306 = por %p304, %p305
    %p308 = scmp.ne.s32.totalorder %s293, %s307
    %p309 = scmp.eq.s32.totalorder %s38, 0
    %p310 = por %p308, %p309
    %s312 = sadd.s32 %s311, 1
    %p315 = scmp.eq.s32.totalorder %s32, 1
    %p316 = scmp.ne.s32.totalorder %s311, %s313
    %p317 = scmp.eq.s32.totalorder %s32, 0
    %p318 = por %p316, %p317
    %p319 = scmp.ne.s32.totalorder %s311, %s313
    %p320 = scmp.eq.s32.totalorder %s37, 1
    %p321 = por %p319, %p320
    %p322 = scmp.ne.s32.totalorder %s313, %s314
    %p323 = scmp.eq.s32.totalorder %s37, 0
    %p324 = por %p322, %p323
    %p325 = scmp.ne.s32.totalorder %s313, %s314
    %p326 = scmp.eq.s32.totalorder %s38, 1
    %p327 = por %p325, %p326
    %p329 = scmp.ne.s32.totalorder %s314, %s328
    %p330 = scmp.eq.s32.totalorder %s38, 0
    %p331 = por %p329, %p330
    %s333 = sadd.s32 %s332, 1
    %p336 = scmp.eq.s32.totalorder %s32, 1
    %p337 = scmp.ne.s32.totalorder %s332, %s334
    %p338 = scmp.eq.s32.totalorder %s32, 0
    %p339 = por %p337, %p338
    %p340 = scmp.ne.s32.totalorder %s332, %s334
    %p341 = scmp.eq.s32.totalorder %s37, 1
    %p342 = por %p340, %p341
    %p343 = scmp.ne.s32.totalorder %s334, %s335
    %p344 = scmp.eq.s32.totalorder %s37, 0
    %p345 = por %p343, %p344
    %p346 = scmp.ne.s32.totalorder %s334, %s335
    %p347 = scmp.eq.s32.totalorder %s38, 1
    %p348 = por %p346, %p347
    %p350 = scmp.ne.s32.totalorder %s335, %s349
    %p351 = scmp.eq.s32.totalorder %s38, 0
    %p352 = por %p350, %p351
    %s354 = sadd.s32 %s353, 1
    %p357 = scmp.eq.s32.totalorder %s32, 1
    %p358 = scmp.ne.s32.totalorder %s353, %s355
    %p359 = scmp.eq.s32.totalorder %s32, 0
    %p360 = por %p358, %p359
    %p361 = scmp.ne.s32.totalorder %s353, %s355
    %p362 = scmp.eq.s32.totalorder %s37, 1
    %p363 = por %p361, %p362
    %p364 = scmp.ne.s32.totalorder %s355, %s356
    %p365 = scmp.eq.s32.totalorder %s37, 0
    %p366 = por %p364, %p365
    %p367 = scmp.ne.s32.totalorder %s355, %s356
    %p368 = scmp.eq.s32.totalorder %s38, 1
    %p369 = por %p367, %p368
    %p371 = scmp.ne.s32.totalorder %s356, %s370
    %p372 = scmp.eq.s32.totalorder %s38, 0
    %p373 = por %p371, %p372
    %s375 = sadd.s32 %s374, 1
    %p378 = scmp.eq.s32.totalorder %s32, 1
    %p379 = scmp.ne.s32.totalorder %s374, %s376
    %p380 = scmp.eq.s32.totalorder %s32, 0
    %p381 = por %p379, %p380
    %p382 = scmp.ne.s32.totalorder %s374, %s376
    %p383 = scmp.eq.s32.totalorder %s37, 1
    %p384 = por %p382, %p383
    %p385 = scmp.ne.s32.totalorder %s376, %s377
    %p386 = scmp.eq.s32.totalorder %s37, 0
    %p387 = por %p385, %p386
    %p388 = scmp.ne.s32.totalorder %s376, %s377
    %p389 = scmp.eq.s32.totalorder %s38, 1
    %p390 = por %p388, %p389
    %p392 = scmp.ne.s32.totalorder %s377, %s391
    %p393 = scmp.eq.s32.totalorder %s38, 0
    %p394 = por %p392, %p393
    %s395 = ssub.s32 %s39, %s51
    %p396 = scmp.eq.s32.totalorder %s395, 0
    %s398 = sadd.s32 %s397, 1
    %s399 = scalar_select %p396, %s397, %s398
    %p402 = pneg %p396
    %p403 = scmp.eq.s32.totalorder %s32, 1
    %p404 = por %p402, %p403
    %p405 = scmp.ne.s32.totalorder %s397, %s400
    %p406 = scmp.eq.s32.totalorder %s32, 0
    %p407 = por %p405, %p406
    %p408 = scmp.ne.s32.totalorder %s397, %s400
    %p409 = scmp.eq.s32.totalorder %s37, 1
    %p410 = por %p408, %p409
    %p411 = scmp.ne.s32.totalorder %s400, %s401
    %p412 = scmp.eq.s32.totalorder %s37, 0
    %p413 = por %p411, %p412
    %p414 = scmp.ne.s32.totalorder %s400, %s401
    %p415 = scmp.eq.s32.totalorder %s38, 1
    %p416 = por %p414, %p415
    %p418 = scmp.ne.s32.totalorder %s401, %s417
    %p419 = scmp.eq.s32.totalorder %s38, 0
    %p420 = por %p418, %p419
    %p421 = scmp.le.s32.totalorder 1, %s32
    %p422 = scmp.lt.s32.totalorder %s32, 3
    %p423 = pnand %p421, %p422
    %p424 = pneg %p423
    // Predicated region
    $region9: #{tpu_custom_call.1} parent=5 // pred_check
      _
    $region10: #{tpu_custom_call.1} parent=5 // pred_check_branch
      %426 = sbr.rel (%p423) target = $region12
    $region11: #{tpu_custom_call.1} parent=5 // pred_region
      %s427 = ssub.s32 %s32, 1
      // Predicated region
      $region13: #{tpu_custom_call.1} parent=11 // pred_check
        %p428 = pneg %p219
      $region14: #{tpu_custom_call.1} parent=11 // pred_check_branch
        %430 = sbr.rel (%p428) target = $region16
      $region15: #{tpu_custom_call.1} parent=11 // pred_region
        _
      $region16: #{tpu_custom_call.1} parent=11 // pred_fallthru
        _
      // Predicated region
      $region17: #{tpu_custom_call.1} parent=11 // pred_check
        %p431 = pneg %p240
      $region18: #{tpu_custom_call.1} parent=11 // pred_check_branch
        %433 = sbr.rel (%p431) target = $region20
      $region19: #{tpu_custom_call.1} parent=11 // pred_region
        _
      $region20: #{tpu_custom_call.1} parent=11 // pred_fallthru
        _
      // Predicated region
      $region21: #{tpu_custom_call.1} parent=11 // pred_check
        %p434 = pneg %p261
      $region22: #{tpu_custom_call.1} parent=11 // pred_check_branch
        %436 = sbr.rel (%p434) target = $region24
      $region23: #{tpu_custom_call.1} parent=11 // pred_region
        _
      $region24: #{tpu_custom_call.1} parent=11 // pred_fallthru
        _
      // Predicated region
      $region25: #{tpu_custom_call.1} parent=11 // pred_check
        %p437 = pneg %p282
      $region26: #{tpu_custom_call.1} parent=11 // pred_check_branch
        %439 = sbr.rel (%p437) target = $region28
      $region27: #{tpu_custom_call.1} parent=11 // pred_region
        _
      $region28: #{tpu_custom_call.1} parent=11 // pred_fallthru
        _
      // Predicated region
      $region29: #{tpu_custom_call.1} parent=11 // pred_check
        %p440 = pneg %p303
      $region30: #{tpu_custom_call.1} parent=11 // pred_check_branch
        %442 = sbr.rel (%p440) target = $region32
      $region31: #{tpu_custom_call.1} parent=11 // pred_region
        _
      $region32: #{tpu_custom_call.1} parent=11 // pred_fallthru
        _
      // Predicated region
      $region33: #{tpu_custom_call.1} parent=11 // pred_check
        %p443 = pneg %p324
      $region34: #{tpu_custom_call.1} parent=11 // pred_check_branch
        %445 = sbr.rel (%p443) target = $region36
      $region35: #{tpu_custom_call.1} parent=11 // pred_region
        _
      $region36: #{tpu_custom_call.1} parent=11 // pred_fallthru
        _
      // Predicated region
      $region37: #{tpu_custom_call.1} parent=11 // pred_check
        %p446 = pneg %p345
      $region38: #{tpu_custom_call.1} parent=11 // pred_check_branch
        %448 = sbr.rel (%p446) target = $region40
      $region39: #{tpu_custom_call.1} parent=11 // pred_region
        _
      $region40: #{tpu_custom_call.1} parent=11 // pred_fallthru
        _
      // Predicated region
      $region41: #{tpu_custom_call.1} parent=11 // pred_check
        %p449 = pneg %p366
      $region42: #{tpu_custom_call.1} parent=11 // pred_check_branch
        %451 = sbr.rel (%p449) target = $region44
      $region43: #{tpu_custom_call.1} parent=11 // pred_region
        _
      $region44: #{tpu_custom_call.1} parent=11 // pred_fallthru
        _
      // Predicated region
      $region45: #{tpu_custom_call.1} parent=11 // pred_check
        %p452 = pneg %p387
      $region46: #{tpu_custom_call.1} parent=11 // pred_check_branch
        %454 = sbr.rel (%p452) target = $region48
      $region47: #{tpu_custom_call.1} parent=11 // pred_region
        _
      $region48: #{tpu_custom_call.1} parent=11 // pred_fallthru
        _
    $region12: #{tpu_custom_call.1} parent=5 // pred_fallthru
      _
    %p455 = scmp.lt.s32.totalorder %s32, 2
    // Predicated region
    $region49: #{tpu_custom_call.1} parent=5 // pred_check
      %p456 = pneg %p455
    $region50: #{tpu_custom_call.1} parent=5 // pred_check_branch
      %458 = sbr.rel (%p456) target = $region52
    $region51: #{tpu_custom_call.1} parent=5 // pred_region
      // Predicated region
      $region53: #{tpu_custom_call.1} parent=51 // pred_check
        %p459 = pneg %p64
      $region54: #{tpu_custom_call.1} parent=51 // pred_check_branch
        %461 = sbr.rel (%p459) target = $region56
      $region55: #{tpu_custom_call.1} parent=51 // pred_region
        %p462 = scmp.lt.s32.totalorder %s39, 1
        %s463 = scalar_select %p462, %s39, 1
        %s464 = smul.addr %s463, 8
        %s465 = scalar_lea.vmem %s2, %s464
      $region56: #{tpu_custom_call.1} parent=51 // pred_fallthru
        _
      // Predicated region
      $region57: #{tpu_custom_call.1} parent=51 // pred_check
        %p466 = pneg %p98
      $region58: #{tpu_custom_call.1} parent=51 // pred_check_branch
        %468 = sbr.rel (%p466) target = $region60
      $region59: #{tpu_custom_call.1} parent=51 // pred_region
        %s469 = sld [smem:[#allocation5 + %s39]]
        %s470 = sadd.s32 %s469, %s40
        %p471 = scmp.lt.s32.totalorder %s470, 0
        %s472 = scalar_select %p471, %s470, 0
        %p473 = scmp.lt.s32.totalorder %s472, 0
        %s474 = scalar_select %p473, %s472, 0
        %s475 = scalar_lea.vmem %s3, %s474
        %s476 = sld [smem:[#allocation5 + %s39]]
        %s477 = sadd.s32 %s476, %s40
        %p478 = scmp.lt.s32.totalorder %s477, 0
        %s479 = scalar_select %p478, %s477, 0
      $region60: #{tpu_custom_call.1} parent=51 // pred_fallthru
        _
      // Predicated region
      $region61: #{tpu_custom_call.1} parent=51 // pred_check
        %p480 = pneg %p132
      $region62: #{tpu_custom_call.1} parent=51 // pred_check_branch
        %482 = sbr.rel (%p480) target = $region64
      $region63: #{tpu_custom_call.1} parent=51 // pred_region
        %s483 = sld [smem:[#allocation5 + %s39]]
        %s484 = sadd.s32 %s483, %s40
        %p485 = scmp.lt.s32.totalorder %s484, 0
        %s486 = scalar_select %p485, %s484, 0
        %s487 = smul.u32 16, %s486
        %p488 = scmp.lt.s32.totalorder %s487, 15
        %s489 = scalar_select %p488, %s487, 15
        %s490 = smul.addr %s489, 8
        %s491 = scalar_lea.vmem %s4, %s490
        %s492 = sld [smem:[#allocation5 + %s39]]
        %s493 = sadd.s32 %s492, %s40
        %p494 = scmp.lt.s32.totalorder %s493, 0
        %s495 = scalar_select %p494, %s493, 0
        %s496 = smul.u32 16, %s495
      $region64: #{tpu_custom_call.1} parent=51 // pred_fallthru
        _
      // Predicated region
      $region65: #{tpu_custom_call.1} parent=51 // pred_check
        %p497 = pneg %p166
      $region66: #{tpu_custom_call.1} parent=51 // pred_check_branch
        %499 = sbr.rel (%p497) target = $region68
      $region67: #{tpu_custom_call.1} parent=51 // pred_region
        %s500 = sld [smem:[#allocation5 + %s39]]
        %s501 = sadd.s32 %s500, %s40
        %p502 = scmp.lt.s32.totalorder %s501, 0
        %s503 = scalar_select %p502, %s501, 0
        %p504 = scmp.lt.s32.totalorder %s503, 0
        %s505 = scalar_select %p504, %s503, 0
        %s506 = smul.addr %s505, 8
        %s507 = scalar_lea.vmem %s5, %s506
        %s508 = sld [smem:[#allocation5 + %s39]]
        %s509 = sadd.s32 %s508, %s40
        %p510 = scmp.lt.s32.totalorder %s509, 0
        %s511 = scalar_select %p510, %s509, 0
      $region68: #{tpu_custom_call.1} parent=51 // pred_fallthru
        _
      // Predicated region
      $region69: #{tpu_custom_call.1} parent=51 // pred_check
        %p512 = pneg %p192
      $region70: #{tpu_custom_call.1} parent=51 // pred_check_branch
        %514 = sbr.rel (%p512) target = $region72
      $region71: #{tpu_custom_call.1} parent=51 // pred_region
        %p515 = scmp.lt.s32.totalorder %s39, 1
        %s516 = scalar_select %p515, %s39, 1
        %s517 = smul.addr %s516, 8
        %s518 = scalar_lea.vmem %s6, %s517
      $region72: #{tpu_custom_call.1} parent=51 // pred_fallthru
        _
    $region52: #{tpu_custom_call.1} parent=5 // pred_fallthru
      _
    %p519 = scmp.le.s32.totalorder 1, %s32
    %p520 = scmp.lt.s32.totalorder %s32, 3
    %p521 = pnand %p519, %p520
    %p522 = pneg %p521
    // Predicated region
    $region73: #{tpu_custom_call.1} parent=5 // pred_check
      _
    $region74: #{tpu_custom_call.1} parent=5 // pred_check_branch
      %524 = sbr.rel (%p521) target = $region76
    $region75: #{tpu_custom_call.1} parent=5 // pred_region
      %s525 = ssub.s32 %s32, 1
      %p526 = scmp.lt.s32.totalorder %s41, 1
      %s527 = scalar_select %p526, %s41, 1
      %s528 = smul.addr %s527, 8
      %s529 = scalar_lea.vmem %s2, %s528
      %p530 = pneg %p70
      %p531 = pneg %p67
      %s532 = sld [smem:[#allocation5 + %s41]]
      %s533 = sadd.s32 %s532, %s42
      %p534 = scmp.lt.s32.totalorder %s533, 0
      %s535 = scalar_select %p534, %s533, 0
      %p536 = scmp.lt.s32.totalorder %s535, 0
      %s537 = scalar_select %p536, %s535, 0
      %s538 = scalar_lea.vmem %s3, %s537
      %p539 = pneg %p104
      %p540 = pneg %p101
      %s541 = sld [smem:[#allocation5 + %s41]]
      %s542 = sadd.s32 %s541, %s42
      %p543 = scmp.lt.s32.totalorder %s542, 0
      %s544 = scalar_select %p543, %s542, 0
      %s545 = smul.u32 16, %s544
      %p546 = scmp.lt.s32.totalorder %s545, 15
      %s547 = scalar_select %p546, %s545, 15
      %s548 = smul.addr %s547, 8
      %s549 = scalar_lea.vmem %s4, %s548
      %p550 = pneg %p138
      %p551 = pneg %p135
      %s552 = sld [smem:[#allocation5 + %s41]]
      %s553 = sadd.s32 %s552, %s42
      %p554 = scmp.lt.s32.totalorder %s553, 0
      %s555 = scalar_select %p554, %s553, 0
      %p556 = scmp.lt.s32.totalorder %s555, 0
      %s557 = scalar_select %p556, %s555, 0
      %s558 = smul.addr %s557, 8
      %s559 = scalar_lea.vmem %s5, %s558
      %p560 = pneg %p172
      %p561 = pneg %p169
      %p562 = scmp.lt.s32.totalorder %s41, 1
      %s563 = scalar_select %p562, %s41, 1
      %s564 = smul.addr %s563, 8
      %s565 = scalar_lea.vmem %s6, %s564
      %p566 = pneg %p198
      %p567 = pneg %p195
      %p568 = pneg %p219
      %p569 = pneg %p216
      %p570 = pneg %p240
      %p571 = pneg %p237
      %p572 = pneg %p261
      %p573 = pneg %p258
      %p574 = pneg %p282
      %p575 = pneg %p279
      %p576 = pneg %p303
      %p577 = pneg %p300
      %p578 = pneg %p324
      %p579 = pneg %p321
      %p580 = pneg %p345
      %p581 = pneg %p342
      %p582 = pneg %p366
      %p583 = pneg %p363
      %p584 = pneg %p387
      %p585 = pneg %p384
      %p586 = pneg %p413
      %p587 = pneg %p410
      %p588 = scmp.lt.s32.totalorder %s41, 1
      %s589 = scalar_select %p588, %s41, 1
      %s590 = smul.addr %s589, 8
      %s591 = scalar_lea.vmem %s16, %s590
      %p592 = scmp.lt.s32.totalorder %s41, 1
      %s593 = scalar_select %p592, %s41, 1
      %s594 = smul.addr %s593, 8
      %s595 = scalar_lea.vmem %s2, %s594
      %s596 = sld [smem:[#allocation5 + %s41]]
      %s597 = sadd.s32 %s596, %s42
      %p598 = scmp.lt.s32.totalorder %s597, 0
      %s599 = scalar_select %p598, %s597, 0
      %p600 = scmp.lt.s32.totalorder %s599, 0
      %s601 = scalar_select %p600, %s599, 0
      %s602 = scalar_lea.vmem %s3, %s601
      %s603 = sld [smem:[#allocation5 + %s41]]
      %s604 = sadd.s32 %s603, %s42
      %p605 = scmp.lt.s32.totalorder %s604, 0
      %s606 = scalar_select %p605, %s604, 0
      %s607 = sld [smem:[#allocation5 + %s41]]
      %s608 = sadd.s32 %s607, %s42
      %p609 = scmp.lt.s32.totalorder %s608, 0
      %s610 = scalar_select %p609, %s608, 0
      %s611 = smul.u32 16, %s610
      %p612 = scmp.lt.s32.totalorder %s611, 15
      %s613 = scalar_select %p612, %s611, 15
      %s614 = smul.addr %s613, 8
      %s615 = scalar_lea.vmem %s4, %s614
      %s616 = sld [smem:[#allocation5 + %s41]]
      %s617 = sadd.s32 %s616, %s42
      %p618 = scmp.lt.s32.totalorder %s617, 0
      %s619 = scalar_select %p618, %s617, 0
      %s620 = smul.u32 16, %s619
      %s621 = sld [smem:[#allocation5 + %s41]]
      %s622 = sadd.s32 %s621, %s42
      %p623 = scmp.lt.s32.totalorder %s622, 0
      %s624 = scalar_select %p623, %s622, 0
      %p625 = scmp.lt.s32.totalorder %s624, 0
      %s626 = scalar_select %p625, %s624, 0
      %s627 = smul.addr %s626, 8
      %s628 = scalar_lea.vmem %s5, %s627
      %s629 = sld [smem:[#allocation5 + %s41]]
      %s630 = sadd.s32 %s629, %s42
      %p631 = scmp.lt.s32.totalorder %s630, 0
      %s632 = scalar_select %p631, %s630, 0
      %p633 = scmp.lt.s32.totalorder %s41, 1
      %s634 = scalar_select %p633, %s41, 1
      %s635 = smul.addr %s634, 8
      %s636 = scalar_lea.vmem %s6, %s635
      %p637 = scmp.lt.s32.totalorder %s41, 1
      %s638 = scalar_select %p637, %s41, 1
      %s639 = smul.addr %s638, 8
      %s640 = scalar_lea.vmem %s16, %s639
      %p641 = scmp.eq.s32.totalorder %s42, 0
      // Predicated region
      $region77: #{tpu_custom_call.1} parent=75 // pred_check
        %p642 = pneg %p641
      $region78: #{tpu_custom_call.1} parent=75 // pred_check_branch
        %644 = sbr.rel (%p642) target = $region80
      $region79: #{tpu_custom_call.1} parent=75 // pred_region
        %vm645 = vcmask 72704
        %646 = vst.msk [vmem:[#allocation2] sm:$0xff] %vm645, 0.0
        %vm647 = vcmask 64512
        %648 = vst.msk [vmem:[#allocation3] sm:$0xff] %vm647, -inf
      $region80: #{tpu_custom_call.1} parent=75 // pred_fallthru
        _
      %s649 = sld [smem:[#allocation6 + %s41]]
      %p650 = scmp.lt.s32.totalorder %s42, %s649
      // Predicated region
      $region81: #{tpu_custom_call.1} parent=75 // pred_check
        %p651 = pneg %p650
      $region82: #{tpu_custom_call.1} parent=75 // pred_check_branch
        %653 = sbr.rel (%p651) target = $region84
      $region83: #{tpu_custom_call.1} parent=75 // pred_region
        %s654 = smul.u32 %s41, 8
        %v655 = vld [vmem:[%s602] sm:$0x1]
        %v656 = vstv %s654
        %v657 = vsub.s32 %v655, %v656
        %v658 = vlaneseq
        %v659 = vshrl.u32 %v658, 7
        %v660 = vlaneseq
        %v661 = vshrl.u32 %v660, 7
        %v662 = vsub.s32 0, %v661
        %v663 = vrot.slane %v657, %v662
        %vm664 = vcmp.eq.s32.totalorder %v663, %v659
        %v665 = vld [vmem:[#allocation2] sm:$0xff]
        %v666 = vsel %vm664, 1, 0
        %v667 = vcvt.s32.f32 %v666
        %v668 = vld [vmem:[%s615] sm:$0xff]
        %v669 = vld [vmem:[%s615 + $0x8] sm:$0xff]
        %v670 = vld [vmem:[%s615 + $0x10] sm:$0xff]
        %v671 = vld [vmem:[%s615 + $0x18] sm:$0xff]
        %v672 = vld [vmem:[%s615 + $0x20] sm:$0xff]
        %v673 = vld [vmem:[%s615 + $0x28] sm:$0xff]
        %v674 = vld [vmem:[%s615 + $0x30] sm:$0xff]
        %v675 = vld [vmem:[%s615 + $0x38] sm:$0xff]
        %v676 = vld [vmem:[%s615 + $0x40] sm:$0xff]
        %v677 = vld [vmem:[%s615 + $0x48] sm:$0xff]
        %v678 = vld [vmem:[%s615 + $0x50] sm:$0xff]
        %v679 = vld [vmem:[%s615 + $0x58] sm:$0xff]
        %v680 = vld [vmem:[%s615 + $0x60] sm:$0xff]
        %v681 = vld [vmem:[%s615 + $0x68] sm:$0xff]
        %v682 = vld [vmem:[%s615 + $0x70] sm:$0xff]
        %v683 = vld [vmem:[%s615 + $0x78] sm:$0xff]
        %684 = vmatprep.subr.mxu0 0.0
        %685 = vmatpush1.msra.mxu0 %v683
        %686 = vmatprep.subr.mxu0 0.0
        %687 = vmatpush1.msra.mxu0 %v682
        %688 = vmatprep.subr.mxu0 0.0
        %689 = vmatpush1.msra.mxu0 %v681
        %690 = vmatprep.subr.mxu0 0.0
        %691 = vmatpush1.msra.mxu0 %v680
        %692 = vmatprep.subr.mxu0 0.0
        %693 = vmatpush1.msra.mxu0 %v679
        %694 = vmatprep.subr.mxu0 0.0
        %695 = vmatpush1.msra.mxu0 %v678
        %696 = vmatprep.subr.mxu0 0.0
        %697 = vmatpush1.msra.mxu0 %v677
        %698 = vmatprep.subr.mxu0 0.0
        %699 = vmatpush1.msra.mxu0 %v676
        %700 = vmatprep.subr.mxu0 0.0
        %701 = vmatpush1.msra.mxu0 %v675
        %702 = vmatprep.subr.mxu0 0.0
        %703 = vmatpush1.msra.mxu0 %v674
        %704 = vmatprep.subr.mxu0 0.0
        %705 = vmatpush1.msra.mxu0 %v673
        %706 = vmatprep.subr.mxu0 0.0
        %707 = vmatpush1.msra.mxu0 %v672
        %708 = vmatprep.subr.mxu0 0.0
        %709 = vmatpush1.msra.mxu0 %v671
        %710 = vmatprep.subr.mxu0 0.0
        %711 = vmatpush1.msra.mxu0 %v670
        %712 = vmatprep.subr.mxu0 0.0
        %713 = vmatpush1.msra.mxu0 %v669
        %714 = vmatprep.subr.mxu0 0.0
        %715 = vmatpush1.msra.mxu0 %v668
        %716 = vmatprep.subr.mxu0 0.0
        %717 = vmatpush2.msra.mxu0 0.0
        %718 = vmatprep.subr.mxu0 0.0
        %719 = vmatpush2.msra.mxu0 0.0
        %720 = vmatprep.subr.mxu0 0.0
        %721 = vmatpush2.msra.mxu0 0.0
        %722 = vmatprep.subr.mxu0 0.0
        %723 = vmatpush2.msra.mxu0 0.0
        %724 = vmatprep.subr.mxu0 0.0
        %725 = vmatpush2.msra.mxu0 0.0
        %726 = vmatprep.subr.mxu0 0.0
        %727 = vmatpush2.msra.mxu0 0.0
        %728 = vmatprep.subr.mxu0 0.0
        %729 = vmatpush2.msra.mxu0 0.0
        %730 = vmatprep.subr.mxu0 0.0
        %731 = vmatpush2.msra.mxu0 0.0
        %732 = vmatprep.subr.mxu0 0.0
        %733 = vmatpush2.msra.mxu0 0.0
        %734 = vmatprep.subr.mxu0 0.0
        %735 = vmatpush2.msra.mxu0 0.0
        %736 = vmatprep.subr.mxu0 0.0
        %737 = vmatpush2.msra.mxu0 0.0
        %738 = vmatprep.subr.mxu0 0.0
        %739 = vmatpush2.msra.mxu0 0.0
        %740 = vmatprep.subr.mxu0 0.0
        %741 = vmatpush2.msra.mxu0 0.0
        %742 = vmatprep.subr.mxu0 0.0
        %743 = vmatpush2.msra.mxu0 0.0
        %744 = vmatprep.subr.mxu0 0.0
        %745 = vmatpush2.msra.mxu0 0.0
        %746 = vmatprep.subr.mxu0 0.0
        %747 = vmatpush2.msra.mxu0 0.0
        %748 = vmatprep.mubr.f32.mxu0 0.0
        %749 = vmatmul.mubr.f32.gmra.mxu0 %v667
        %v750 = vpop.f32.mrf.mxu0
        %v751 = vadd.f32 0.0, %v750
        %v752 = vpop.f32.mrf.mxu0
        %753 = vdwg.mxu0
        %v754 = vadd.f32 %v665, %v751
        %vm755 = vcmask 72704
        %756 = vst.msk [vmem:[#allocation2] sm:$0xff] %vm755, %v754
        %v757 = vsel %vm664, 0.0, -inf
        %v758 = vld [vmem:[%s628] sm:$0xff]
        %v759 = vlaneseq
        %v760 = vshrl.u32 %v759, 7
        %v761 = vsub.s32 0, %v760
        %v762 = vrot.slane %v758, %v761
        %v763 = vadd.f32 %v757, %v762
        %764 = vmax.xlane.f32.xlu0 %v763
        %v765 = vpop.xlane.xlu0 %764
        %v766 = vld [vmem:[#allocation3] sm:$0xff]
        %v767 = vmax.f32 %v766, %v765
        %vm768 = vcmask 7168
        %769 = vst.msk [vmem:[#allocation3] sm:$0xff] %vm768, %v767
        %v770 = vlaneseq
        %v771 = vshrl.u32 %v770, 7
        %v772 = vsub.s32 1, %v771
        %v773 = vrot.slane %v758, %v772
        %v774 = vadd.f32 %v757, %v773
        %775 = vmax.xlane.f32.xlu0 %v774
        %v776 = vpop.xlane.xlu0 %775
        %v777 = vld [vmem:[#allocation3] sm:$0xff]
        %v778 = vmax.f32 %v777, %v776
        %vm779 = vcmask 15368
        %780 = vst.msk [vmem:[#allocation3] sm:$0xff] %vm779, %v778
        %v781 = vlaneseq
        %v782 = vshrl.u32 %v781, 7
        %v783 = vsub.s32 2, %v782
        %v784 = vrot.slane %v758, %v783
        %v785 = vadd.f32 %v757, %v784
        %786 = vmax.xlane.f32.xlu0 %v785
        %v787 = vpop.xlane.xlu0 %786
        %v788 = vld [vmem:[#allocation3] sm:$0xff]
        %v789 = vmax.f32 %v788, %v787
        %vm790 = vcmask 23568
        %791 = vst.msk [vmem:[#allocation3] sm:$0xff] %vm790, %v789
        %v792 = vlaneseq
        %v793 = vshrl.u32 %v792, 7
        %v794 = vsub.s32 3, %v793
        %v795 = vrot.slane %v758, %v794
        %v796 = vadd.f32 %v757, %v795
        %797 = vmax.xlane.f32.xlu0 %v796
        %v798 = vpop.xlane.xlu0 %797
        %v799 = vld [vmem:[#allocation3] sm:$0xff]
        %v800 = vmax.f32 %v799, %v798
        %vm801 = vcmask 31768
        %802 = vst.msk [vmem:[#allocation3] sm:$0xff] %vm801, %v800
        %v803 = vlaneseq
        %v804 = vshrl.u32 %v803, 7
        %v805 = vsub.s32 4, %v804
        %v806 = vrot.slane %v758, %v805
        %v807 = vadd.f32 %v757, %v806
        %808 = vmax.xlane.f32.xlu0 %v807
        %v809 = vpop.xlane.xlu0 %808
        %v810 = vld [vmem:[#allocation3] sm:$0xff]
        %v811 = vmax.f32 %v810, %v809
        %vm812 = vcmask 39968
        %813 = vst.msk [vmem:[#allocation3] sm:$0xff] %vm812, %v811
        %v814 = vlaneseq
        %v815 = vshrl.u32 %v814, 7
        %v816 = vsub.s32 5, %v815
        %v817 = vrot.slane %v758, %v816
        %v818 = vadd.f32 %v757, %v817
        %819 = vmax.xlane.f32.xlu0 %v818
        %v820 = vpop.xlane.xlu0 %819
        %v821 = vld [vmem:[#allocation3] sm:$0xff]
        %v822 = vmax.f32 %v821, %v820
        %vm823 = vcmask 48168
        %824 = vst.msk [vmem:[#allocation3] sm:$0xff] %vm823, %v822
        %v825 = vlaneseq
        %v826 = vshrl.u32 %v825, 7
        %v827 = vsub.s32 6, %v826
        %v828 = vrot.slane %v758, %v827
        %v829 = vadd.f32 %v757, %v828
        %830 = vmax.xlane.f32.xlu0 %v829
        %v831 = vpop.xlane.xlu0 %830
        %v832 = vld [vmem:[#allocation3] sm:$0xff]
        %v833 = vmax.f32 %v832, %v831
        %vm834 = vcmask 56368
        %835 = vst.msk [vmem:[#allocation3] sm:$0xff] %vm834, %v833
        %v836 = vlaneseq
        %v837 = vshrl.u32 %v836, 7
        %v838 = vsub.s32 7, %v837
        %v839 = vrot.slane %v758, %v838
        %v840 = vadd.f32 %v757, %v839
        %841 = vmax.xlane.f32.xlu0 %v840
        %v842 = vpop.xlane.xlu0 %841
        %v843 = vld [vmem:[#allocation3] sm:$0xff]
        %v844 = vmax.f32 %v843, %v842
        %vm845 = vcmask 64568
        %846 = vst.msk [vmem:[#allocation3] sm:$0xff] %vm845, %v844
      $region84: #{tpu_custom_call.1} parent=75 // pred_fallthru
        _
      // Predicated region
      $region85: #{tpu_custom_call.1} parent=75 // pred_check
        %p847 = pneg %p641
      $region86: #{tpu_custom_call.1} parent=75 // pred_check_branch
        %849 = sbr.rel (%p847) target = $region88
      $region87: #{tpu_custom_call.1} parent=75 // pred_region
        %v850 = vld [vmem:[#allocation2] sm:$0xff]
        %v851 = vmax.f32 %v850, 1.0
        %853 = vset.pattern.permute.xlu0 8
        %854 = vperm.xlu0 %853, %v851
        %v855 = vpop.permute.xlu0 %854
        %v857 = vrcp.pop %v855
        %v858 = vmul.f32 %v850, %v857
        %vm859 = vcmp.gt.f32.partialorder %v850, 0.0
        %v860 = vld [vmem:[#allocation3] sm:$0xff]
        %v861 = vsel %vm859, 1, 0
        %862 = vset.pattern.permute.xlu0 8
        %863 = vperm.xlu0 %862, %v861
        %v864 = vpop.permute.xlu0 %863
        %vm865 = vcmp.eq.s32.totalorder %v864, 1
        %v866 = vsel %vm865, %v860, 0.0
        %v867 = vld [vmem:[%s595] sm:$0xff]
        %v868 = vlaneseq
        %v869 = vand.u32 %v868, 127
        %v870 = vld [vmem:[%s636] sm:$0xff]
        %871 = vset.pattern.permute.xlu0 0
        %872 = vperm.xlu0 %871, %v870
        %v873 = vpop.permute.xlu0 %872
        %vm874 = vcmp.eq.s32.totalorder %v873, %v869
        %v875 = vsel %vm874, 1, 0
        %v876 = vcvt.s32.f32 %v875
        %v877 = vld [vmem:[%s7] sm:$0xff]
        %vm878 = vcmask 64512
        %v880 = vsel %vm878, %v876, 0
        %882 = vmatprep.subr.mxu0 0.0
        %883 = vmatpush1.msra.mxu0 0.0
        %884 = vmatprep.subr.mxu0 0.0
        %885 = vmatpush1.msra.mxu0 0.0
        %886 = vmatprep.subr.mxu0 0.0
        %887 = vmatpush1.msra.mxu0 0.0
        %888 = vmatprep.subr.mxu0 0.0
        %889 = vmatpush1.msra.mxu0 0.0
        %890 = vmatprep.subr.mxu0 0.0
        %891 = vmatpush1.msra.mxu0 0.0
        %892 = vmatprep.subr.mxu0 0.0
        %893 = vmatpush1.msra.mxu0 0.0
        %894 = vmatprep.subr.mxu0 0.0
        %895 = vmatpush1.msra.mxu0 0.0
        %896 = vmatprep.subr.mxu0 0.0
        %897 = vmatpush1.msra.mxu0 0.0
        %898 = vmatprep.subr.mxu0 0.0
        %899 = vmatpush1.msra.mxu0 0.0
        %900 = vmatprep.subr.mxu0 0.0
        %901 = vmatpush1.msra.mxu0 0.0
        %902 = vmatprep.subr.mxu0 0.0
        %903 = vmatpush1.msra.mxu0 0.0
        %904 = vmatprep.subr.mxu0 0.0
        %905 = vmatpush1.msra.mxu0 0.0
        %906 = vmatprep.subr.mxu0 0.0
        %907 = vmatpush1.msra.mxu0 0.0
        %908 = vmatprep.subr.mxu0 0.0
        %909 = vmatpush1.msra.mxu0 0.0
        %910 = vmatprep.subr.mxu0 0.0
        %911 = vmatpush1.msra.mxu0 0.0
        %912 = vmatprep.subr.mxu0 0.0
        %913 = vmatpush1.msra.mxu0 %v877
        %914 = vmatprep.subr.mxu0 0.0
        %915 = vmatpush2.msra.mxu0 0.0
        %916 = vmatprep.subr.mxu0 0.0
        %917 = vmatpush2.msra.mxu0 0.0
        %918 = vmatprep.subr.mxu0 0.0
        %919 = vmatpush2.msra.mxu0 0.0
        %920 = vmatprep.subr.mxu0 0.0
        %921 = vmatpush2.msra.mxu0 0.0
        %922 = vmatprep.subr.mxu0 0.0
        %923 = vmatpush2.msra.mxu0 0.0
        %924 = vmatprep.subr.mxu0 0.0
        %925 = vmatpush2.msra.mxu0 0.0
        %926 = vmatprep.subr.mxu0 0.0
        %927 = vmatpush2.msra.mxu0 0.0
        %928 = vmatprep.subr.mxu0 0.0
        %929 = vmatpush2.msra.mxu0 0.0
        %930 = vmatprep.subr.mxu0 0.0
        %931 = vmatpush2.msra.mxu0 0.0
        %932 = vmatprep.subr.mxu0 0.0
        %933 = vmatpush2.msra.mxu0 0.0
        %934 = vmatprep.subr.mxu0 0.0
        %935 = vmatpush2.msra.mxu0 0.0
        %936 = vmatprep.subr.mxu0 0.0
        %937 = vmatpush2.msra.mxu0 0.0
        %938 = vmatprep.subr.mxu0 0.0
        %939 = vmatpush2.msra.mxu0 0.0
        %940 = vmatprep.subr.mxu0 0.0
        %941 = vmatpush2.msra.mxu0 0.0
        %942 = vmatprep.subr.mxu0 0.0
        %943 = vmatpush2.msra.mxu0 0.0
        %944 = vmatprep.subr.mxu0 0.0
        %945 = vmatpush2.msra.mxu0 0.0
        %946 = vmatprep.mubr.f32.mxu0 0.0
        %947 = vmatmul.mubr.f32.gmra.mxu0 %v880
        %v948 = vpop.f32.mrf.mxu0
        %v949 = vadd.f32 0.0, %v948
        %v950 = vpop.f32.mrf.mxu0
        %951 = vdwg.mxu0
        %v952 = vld [vmem:[%s8] sm:$0xff]
        %v953 = vld [vmem:[%s9] sm:$0xff]
        %v955 = vsel %vm878, %v850, 0
        %957 = vmatprep.subr.mxu0 0.0
        %958 = vmatpush1.msra.mxu0 0.0
        %959 = vmatprep.subr.mxu0 0.0
        %960 = vmatpush1.msra.mxu0 0.0
        %961 = vmatprep.subr.mxu0 0.0
        %962 = vmatpush1.msra.mxu0 0.0
        %963 = vmatprep.subr.mxu0 0.0
        %964 = vmatpush1.msra.mxu0 0.0
        %965 = vmatprep.subr.mxu0 0.0
        %966 = vmatpush1.msra.mxu0 0.0
        %967 = vmatprep.subr.mxu0 0.0
        %968 = vmatpush1.msra.mxu0 0.0
        %969 = vmatprep.subr.mxu0 0.0
        %970 = vmatpush1.msra.mxu0 0.0
        %971 = vmatprep.subr.mxu0 0.0
        %972 = vmatpush1.msra.mxu0 0.0
        %973 = vmatprep.subr.mxu0 0.0
        %974 = vmatpush1.msra.mxu0 0.0
        %975 = vmatprep.subr.mxu0 0.0
        %976 = vmatpush1.msra.mxu0 0.0
        %977 = vmatprep.subr.mxu0 0.0
        %978 = vmatpush1.msra.mxu0 0.0
        %979 = vmatprep.subr.mxu0 0.0
        %980 = vmatpush1.msra.mxu0 0.0
        %981 = vmatprep.subr.mxu0 0.0
        %982 = vmatpush1.msra.mxu0 0.0
        %983 = vmatprep.subr.mxu0 0.0
        %984 = vmatpush1.msra.mxu0 0.0
        %985 = vmatprep.subr.mxu0 0.0
        %986 = vmatpush1.msra.mxu0 0.0
        %987 = vmatprep.subr.mxu0 0.0
        %988 = vmatpush1.msra.mxu0 %v953
        %989 = vmatprep.subr.mxu0 0.0
        %990 = vmatpush2.msra.mxu0 0.0
        %991 = vmatprep.subr.mxu0 0.0
        %992 = vmatpush2.msra.mxu0 0.0
        %993 = vmatprep.subr.mxu0 0.0
        %994 = vmatpush2.msra.mxu0 0.0
        %995 = vmatprep.subr.mxu0 0.0
        %996 = vmatpush2.msra.mxu0 0.0
        %997 = vmatprep.subr.mxu0 0.0
        %998 = vmatpush2.msra.mxu0 0.0
        %999 = vmatprep.subr.mxu0 0.0
        %1000 = vmatpush2.msra.mxu0 0.0
        %1001 = vmatprep.subr.mxu0 0.0
        %1002 = vmatpush2.msra.mxu0 0.0
        %1003 = vmatprep.subr.mxu0 0.0
        %1004 = vmatpush2.msra.mxu0 0.0
        %1005 = vmatprep.subr.mxu0 0.0
        %1006 = vmatpush2.msra.mxu0 0.0
        %1007 = vmatprep.subr.mxu0 0.0
        %1008 = vmatpush2.msra.mxu0 0.0
        %1009 = vmatprep.subr.mxu0 0.0
        %1010 = vmatpush2.msra.mxu0 0.0
        %1011 = vmatprep.subr.mxu0 0.0
        %1012 = vmatpush2.msra.mxu0 0.0
        %1013 = vmatprep.subr.mxu0 0.0
        %1014 = vmatpush2.msra.mxu0 0.0
        %1015 = vmatprep.subr.mxu0 0.0
        %1016 = vmatpush2.msra.mxu0 0.0
        %1017 = vmatprep.subr.mxu0 0.0
        %1018 = vmatpush2.msra.mxu0 0.0
        %1019 = vmatprep.subr.mxu0 0.0
        %1020 = vmatpush2.msra.mxu0 0.0
        %1021 = vmatprep.mubr.f32.mxu0 0.0
        %1022 = vmatmul.mubr.f32.gmra.mxu0 %v955
        %v1023 = vpop.f32.mrf.mxu0
        %v1024 = vadd.f32 0.0, %v1023
        %v1025 = vpop.f32.mrf.mxu0
        %1026 = vdwg.mxu0
        %v1028 = vsel %vm878, %v867, 0
        %1030 = vmatprep.subr.mxu0 0.0
        %1031 = vmatpush1.msra.mxu0 0.0
        %1032 = vmatprep.subr.mxu0 0.0
        %1033 = vmatpush1.msra.mxu0 0.0
        %1034 = vmatprep.subr.mxu0 0.0
        %1035 = vmatpush1.msra.mxu0 0.0
        %1036 = vmatprep.subr.mxu0 0.0
        %1037 = vmatpush1.msra.mxu0 0.0
        %1038 = vmatprep.subr.mxu0 0.0
        %1039 = vmatpush1.msra.mxu0 0.0
        %1040 = vmatprep.subr.mxu0 0.0
        %1041 = vmatpush1.msra.mxu0 0.0
        %1042 = vmatprep.subr.mxu0 0.0
        %1043 = vmatpush1.msra.mxu0 0.0
        %1044 = vmatprep.subr.mxu0 0.0
        %1045 = vmatpush1.msra.mxu0 0.0
        %1046 = vmatprep.subr.mxu0 0.0
        %1047 = vmatpush1.msra.mxu0 0.0
        %1048 = vmatprep.subr.mxu0 0.0
        %1049 = vmatpush1.msra.mxu0 0.0
        %1050 = vmatprep.subr.mxu0 0.0
        %1051 = vmatpush1.msra.mxu0 0.0
        %1052 = vmatprep.subr.mxu0 0.0
        %1053 = vmatpush1.msra.mxu0 0.0
        %1054 = vmatprep.subr.mxu0 0.0
        %1055 = vmatpush1.msra.mxu0 0.0
        %1056 = vmatprep.subr.mxu0 0.0
        %1057 = vmatpush1.msra.mxu0 0.0
        %1058 = vmatprep.subr.mxu0 0.0
        %1059 = vmatpush1.msra.mxu0 0.0
        %1060 = vmatprep.subr.mxu0 0.0
        %1061 = vmatpush1.msra.mxu0 %v952
        %1062 = vmatprep.subr.mxu0 0.0
        %1063 = vmatpush2.msra.mxu0 0.0
        %1064 = vmatprep.subr.mxu0 0.0
        %1065 = vmatpush2.msra.mxu0 0.0
        %1066 = vmatprep.subr.mxu0 0.0
        %1067 = vmatpush2.msra.mxu0 0.0
        %1068 = vmatprep.subr.mxu0 0.0
        %1069 = vmatpush2.msra.mxu0 0.0
        %1070 = vmatprep.subr.mxu0 0.0
        %1071 = vmatpush2.msra.mxu0 0.0
        %1072 = vmatprep.subr.mxu0 0.0
        %1073 = vmatpush2.msra.mxu0 0.0
        %1074 = vmatprep.subr.mxu0 0.0
        %1075 = vmatpush2.msra.mxu0 0.0
        %1076 = vmatprep.subr.mxu0 0.0
        %1077 = vmatpush2.msra.mxu0 0.0
        %1078 = vmatprep.subr.mxu0 0.0
        %1079 = vmatpush2.msra.mxu0 0.0
        %1080 = vmatprep.subr.mxu0 0.0
        %1081 = vmatpush2.msra.mxu0 0.0
        %1082 = vmatprep.subr.mxu0 0.0
        %1083 = vmatpush2.msra.mxu0 0.0
        %1084 = vmatprep.subr.mxu0 0.0
        %1085 = vmatpush2.msra.mxu0 0.0
        %1086 = vmatprep.subr.mxu0 0.0
        %1087 = vmatpush2.msra.mxu0 0.0
        %1088 = vmatprep.subr.mxu0 0.0
        %1089 = vmatpush2.msra.mxu0 0.0
        %1090 = vmatprep.subr.mxu0 0.0
        %1091 = vmatpush2.msra.mxu0 0.0
        %1092 = vmatprep.subr.mxu0 0.0
        %1093 = vmatpush2.msra.mxu0 0.0
        %1094 = vmatprep.mubr.f32.mxu0 0.0
        %1095 = vmatmul.mubr.f32.gmra.mxu0 %v1028
        %v1096 = vpop.f32.mrf.mxu0
        %v1097 = vadd.f32 %v1024, %v1096
        %v1098 = vpop.f32.mrf.mxu0
        %1099 = vdwg.mxu0
        %v1100 = vld [vmem:[%s10] sm:$0xff]
        %v1102 = vsel %vm878, %v866, 0
        %1104 = vmatprep.subr.mxu0 0.0
        %1105 = vmatpush1.msra.mxu0 0.0
        %1106 = vmatprep.subr.mxu0 0.0
        %1107 = vmatpush1.msra.mxu0 0.0
        %1108 = vmatprep.subr.mxu0 0.0
        %1109 = vmatpush1.msra.mxu0 0.0
        %1110 = vmatprep.subr.mxu0 0.0
        %1111 = vmatpush1.msra.mxu0 0.0
        %1112 = vmatprep.subr.mxu0 0.0
        %1113 = vmatpush1.msra.mxu0 0.0
        %1114 = vmatprep.subr.mxu0 0.0
        %1115 = vmatpush1.msra.mxu0 0.0
        %1116 = vmatprep.subr.mxu0 0.0
        %1117 = vmatpush1.msra.mxu0 0.0
        %1118 = vmatprep.subr.mxu0 0.0
        %1119 = vmatpush1.msra.mxu0 0.0
        %1120 = vmatprep.subr.mxu0 0.0
        %1121 = vmatpush1.msra.mxu0 0.0
        %1122 = vmatprep.subr.mxu0 0.0
        %1123 = vmatpush1.msra.mxu0 0.0
        %1124 = vmatprep.subr.mxu0 0.0
        %1125 = vmatpush1.msra.mxu0 0.0
        %1126 = vmatprep.subr.mxu0 0.0
        %1127 = vmatpush1.msra.mxu0 0.0
        %1128 = vmatprep.subr.mxu0 0.0
        %1129 = vmatpush1.msra.mxu0 0.0
        %1130 = vmatprep.subr.mxu0 0.0
        %1131 = vmatpush1.msra.mxu0 0.0
        %1132 = vmatprep.subr.mxu0 0.0
        %1133 = vmatpush1.msra.mxu0 0.0
        %1134 = vmatprep.subr.mxu0 0.0
        %1135 = vmatpush1.msra.mxu0 %v1100
        %1136 = vmatprep.subr.mxu0 0.0
        %1137 = vmatpush2.msra.mxu0 0.0
        %1138 = vmatprep.subr.mxu0 0.0
        %1139 = vmatpush2.msra.mxu0 0.0
        %1140 = vmatprep.subr.mxu0 0.0
        %1141 = vmatpush2.msra.mxu0 0.0
        %1142 = vmatprep.subr.mxu0 0.0
        %1143 = vmatpush2.msra.mxu0 0.0
        %1144 = vmatprep.subr.mxu0 0.0
        %1145 = vmatpush2.msra.mxu0 0.0
        %1146 = vmatprep.subr.mxu0 0.0
        %1147 = vmatpush2.msra.mxu0 0.0
        %1148 = vmatprep.subr.mxu0 0.0
        %1149 = vmatpush2.msra.mxu0 0.0
        %1150 = vmatprep.subr.mxu0 0.0
        %1151 = vmatpush2.msra.mxu0 0.0
        %1152 = vmatprep.subr.mxu0 0.0
        %1153 = vmatpush2.msra.mxu0 0.0
        %1154 = vmatprep.subr.mxu0 0.0
        %1155 = vmatpush2.msra.mxu0 0.0
        %1156 = vmatprep.subr.mxu0 0.0
        %1157 = vmatpush2.msra.mxu0 0.0
        %1158 = vmatprep.subr.mxu0 0.0
        %1159 = vmatpush2.msra.mxu0 0.0
        %1160 = vmatprep.subr.mxu0 0.0
        %1161 = vmatpush2.msra.mxu0 0.0
        %1162 = vmatprep.subr.mxu0 0.0
        %1163 = vmatpush2.msra.mxu0 0.0
        %1164 = vmatprep.subr.mxu0 0.0
        %1165 = vmatpush2.msra.mxu0 0.0
        %1166 = vmatprep.subr.mxu0 0.0
        %1167 = vmatpush2.msra.mxu0 0.0
        %1168 = vmatprep.mubr.f32.mxu0 0.0
        %1169 = vmatmul.mubr.f32.gmra.mxu0 %v1102
        %v1170 = vpop.f32.mrf.mxu0
        %v1171 = vadd.f32 0.0, %v1170
        %v1172 = vpop.f32.mrf.mxu0
        %1173 = vdwg.mxu0
        %v1174 = vadd.f32 %v1097, %v1171
        %v1175 = vld [vmem:[%s11] sm:$0xff]
        %v1177 = vsel %vm878, %v858, 0
        %1179 = vmatprep.subr.mxu0 0.0
        %1180 = vmatpush1.msra.mxu0 0.0
        %1181 = vmatprep.subr.mxu0 0.0
        %1182 = vmatpush1.msra.mxu0 0.0
        %1183 = vmatprep.subr.mxu0 0.0
        %1184 = vmatpush1.msra.mxu0 0.0
        %1185 = vmatprep.subr.mxu0 0.0
        %1186 = vmatpush1.msra.mxu0 0.0
        %1187 = vmatprep.subr.mxu0 0.0
        %1188 = vmatpush1.msra.mxu0 0.0
        %1189 = vmatprep.subr.mxu0 0.0
        %1190 = vmatpush1.msra.mxu0 0.0
        %1191 = vmatprep.subr.mxu0 0.0
        %1192 = vmatpush1.msra.mxu0 0.0
        %1193 = vmatprep.subr.mxu0 0.0
        %1194 = vmatpush1.msra.mxu0 0.0
        %1195 = vmatprep.subr.mxu0 0.0
        %1196 = vmatpush1.msra.mxu0 0.0
        %1197 = vmatprep.subr.mxu0 0.0
        %1198 = vmatpush1.msra.mxu0 0.0
        %1199 = vmatprep.subr.mxu0 0.0
        %1200 = vmatpush1.msra.mxu0 0.0
        %1201 = vmatprep.subr.mxu0 0.0
        %1202 = vmatpush1.msra.mxu0 0.0
        %1203 = vmatprep.subr.mxu0 0.0
        %1204 = vmatpush1.msra.mxu0 0.0
        %1205 = vmatprep.subr.mxu0 0.0
        %1206 = vmatpush1.msra.mxu0 0.0
        %1207 = vmatprep.subr.mxu0 0.0
        %1208 = vmatpush1.msra.mxu0 0.0
        %1209 = vmatprep.subr.mxu0 0.0
        %1210 = vmatpush1.msra.mxu0 %v1175
        %1211 = vmatprep.subr.mxu0 0.0
        %1212 = vmatpush2.msra.mxu0 0.0
        %1213 = vmatprep.subr.mxu0 0.0
        %1214 = vmatpush2.msra.mxu0 0.0
        %1215 = vmatprep.subr.mxu0 0.0
        %1216 = vmatpush2.msra.mxu0 0.0
        %1217 = vmatprep.subr.mxu0 0.0
        %1218 = vmatpush2.msra.mxu0 0.0
        %1219 = vmatprep.subr.mxu0 0.0
        %1220 = vmatpush2.msra.mxu0 0.0
        %1221 = vmatprep.subr.mxu0 0.0
        %1222 = vmatpush2.msra.mxu0 0.0
        %1223 = vmatprep.subr.mxu0 0.0
        %1224 = vmatpush2.msra.mxu0 0.0
        %1225 = vmatprep.subr.mxu0 0.0
        %1226 = vmatpush2.msra.mxu0 0.0
        %1227 = vmatprep.subr.mxu0 0.0
        %1228 = vmatpush2.msra.mxu0 0.0
        %1229 = vmatprep.subr.mxu0 0.0
        %1230 = vmatpush2.msra.mxu0 0.0
        %1231 = vmatprep.subr.mxu0 0.0
        %1232 = vmatpush2.msra.mxu0 0.0
        %1233 = vmatprep.subr.mxu0 0.0
        %1234 = vmatpush2.msra.mxu0 0.0
        %1235 = vmatprep.subr.mxu0 0.0
        %1236 = vmatpush2.msra.mxu0 0.0
        %1237 = vmatprep.subr.mxu0 0.0
        %1238 = vmatpush2.msra.mxu0 0.0
        %1239 = vmatprep.subr.mxu0 0.0
        %1240 = vmatpush2.msra.mxu0 0.0
        %1241 = vmatprep.subr.mxu0 0.0
        %1242 = vmatpush2.msra.mxu0 0.0
        %1243 = vmatprep.mubr.f32.mxu0 0.0
        %1244 = vmatmul.mubr.f32.gmra.mxu0 %v1177
        %v1245 = vpop.f32.mrf.mxu0
        %v1246 = vadd.f32 0.0, %v1245
        %v1247 = vpop.f32.mrf.mxu0
        %1248 = vdwg.mxu0
        %v1249 = vadd.f32 %v1174, %v1246
        %v1250 = vld [vmem:[%s12] sm:$0xf]
        %vm1251 = vcmask 31744
        %v1253 = vsel %vm1251, %v949, 0
        %vm1255 = vcmask 1043456
        %v1257 = vsel %vm1255, %v1250, 0
        %1259 = vmatprep.subr.mxu0 0.0
        %1260 = vmatpush1.msra.mxu0 0.0
        %1261 = vmatprep.subr.mxu0 0.0
        %1262 = vmatpush1.msra.mxu0 0.0
        %1263 = vmatprep.subr.mxu0 0.0
        %1264 = vmatpush1.msra.mxu0 0.0
        %1265 = vmatprep.subr.mxu0 0.0
        %1266 = vmatpush1.msra.mxu0 0.0
        %1267 = vmatprep.subr.mxu0 0.0
        %1268 = vmatpush1.msra.mxu0 0.0
        %1269 = vmatprep.subr.mxu0 0.0
        %1270 = vmatpush1.msra.mxu0 0.0
        %1271 = vmatprep.subr.mxu0 0.0
        %1272 = vmatpush1.msra.mxu0 0.0
        %1273 = vmatprep.subr.mxu0 0.0
        %1274 = vmatpush1.msra.mxu0 0.0
        %1275 = vmatprep.subr.mxu0 0.0
        %1276 = vmatpush1.msra.mxu0 0.0
        %1277 = vmatprep.subr.mxu0 0.0
        %1278 = vmatpush1.msra.mxu0 0.0
        %1279 = vmatprep.subr.mxu0 0.0
        %1280 = vmatpush1.msra.mxu0 0.0
        %1281 = vmatprep.subr.mxu0 0.0
        %1282 = vmatpush1.msra.mxu0 0.0
        %1283 = vmatprep.subr.mxu0 0.0
        %1284 = vmatpush1.msra.mxu0 0.0
        %1285 = vmatprep.subr.mxu0 0.0
        %1286 = vmatpush1.msra.mxu0 0.0
        %1287 = vmatprep.subr.mxu0 0.0
        %1288 = vmatpush1.msra.mxu0 0.0
        %1289 = vmatprep.subr.mxu0 0.0
        %1290 = vmatpush1.msra.mxu0 %v1257
        %1291 = vmatprep.subr.mxu0 0.0
        %1292 = vmatpush2.msra.mxu0 0.0
        %1293 = vmatprep.subr.mxu0 0.0
        %1294 = vmatpush2.msra.mxu0 0.0
        %1295 = vmatprep.subr.mxu0 0.0
        %1296 = vmatpush2.msra.mxu0 0.0
        %1297 = vmatprep.subr.mxu0 0.0
        %1298 = vmatpush2.msra.mxu0 0.0
        %1299 = vmatprep.subr.mxu0 0.0
        %1300 = vmatpush2.msra.mxu0 0.0
        %1301 = vmatprep.subr.mxu0 0.0
        %1302 = vmatpush2.msra.mxu0 0.0
        %1303 = vmatprep.subr.mxu0 0.0
        %1304 = vmatpush2.msra.mxu0 0.0
        %1305 = vmatprep.subr.mxu0 0.0
        %1306 = vmatpush2.msra.mxu0 0.0
        %1307 = vmatprep.subr.mxu0 0.0
        %1308 = vmatpush2.msra.mxu0 0.0
        %1309 = vmatprep.subr.mxu0 0.0
        %1310 = vmatpush2.msra.mxu0 0.0
        %1311 = vmatprep.subr.mxu0 0.0
        %1312 = vmatpush2.msra.mxu0 0.0
        %1313 = vmatprep.subr.mxu0 0.0
        %1314 = vmatpush2.msra.mxu0 0.0
        %1315 = vmatprep.subr.mxu0 0.0
        %1316 = vmatpush2.msra.mxu0 0.0
        %1317 = vmatprep.subr.mxu0 0.0
        %1318 = vmatpush2.msra.mxu0 0.0
        %1319 = vmatprep.subr.mxu0 0.0
        %1320 = vmatpush2.msra.mxu0 0.0
        %1321 = vmatprep.subr.mxu0 0.0
        %1322 = vmatpush2.msra.mxu0 0.0
        %1323 = vmatprep.mubr.f32.mxu0 0.0
        %1324 = vmatmul.mubr.f32.gmra.mxu0 %v1253
        %v1325 = vpop.f32.mrf.mxu0
        %v1326 = vadd.f32 0.0, %v1325
        %v1327 = vpop.f32.mrf.mxu0
        %1328 = vdwg.mxu0
        %v1329 = vadd.f32 %v1249, %v1326
        %v1330 = vld [vmem:[%s13] sm:$0x1]
        %v1332 = vlaneseq
        %v1333 = vshrl.u32 %v1332, 7
        %v1334 = vsub.s32 0, %v1333
        %v1335 = vrot.slane %v1330, %v1334
        %v1337 = vadd.f32 %v1329, %v1335
        %v1338 = vmax.f32 %v1337, 0.0
        %v1339 = vld [vmem:[%s14] sm:$0xff]
        %v1340 = vld [vmem:[%s14 + $0x8] sm:$0xff]
        %v1341 = vld [vmem:[%s14 + $0x10] sm:$0xff]
        %v1342 = vld [vmem:[%s14 + $0x18] sm:$0xff]
        %v1343 = vld [vmem:[%s15] sm:$0x1]
        %v1345 = vlaneseq
        %v1346 = vshrl.u32 %v1345, 7
        %v1347 = vsub.s32 0, %v1346
        %v1348 = vrot.slane %v1343, %v1347
        %vm1350 = vcmask 261120
        %v1352 = vsel %vm1350, %v1338, 0
        %1354 = vmatprep.subr.mxu0 0.0
        %1355 = vmatpush1.msra.mxu0 0.0
        %1356 = vmatprep.subr.mxu0 0.0
        %1357 = vmatpush1.msra.mxu0 0.0
        %1358 = vmatprep.subr.mxu0 0.0
        %1359 = vmatpush1.msra.mxu0 0.0
        %1360 = vmatprep.subr.mxu0 0.0
        %1361 = vmatpush1.msra.mxu0 0.0
        %1362 = vmatprep.subr.mxu0 0.0
        %1363 = vmatpush1.msra.mxu0 0.0
        %1364 = vmatprep.subr.mxu0 0.0
        %1365 = vmatpush1.msra.mxu0 0.0
        %1366 = vmatprep.subr.mxu0 0.0
        %1367 = vmatpush1.msra.mxu0 0.0
        %1368 = vmatprep.subr.mxu0 0.0
        %1369 = vmatpush1.msra.mxu0 0.0
        %1370 = vmatprep.subr.mxu0 0.0
        %1371 = vmatpush1.msra.mxu0 0.0
        %1372 = vmatprep.subr.mxu0 0.0
        %1373 = vmatpush1.msra.mxu0 0.0
        %1374 = vmatprep.subr.mxu0 0.0
        %1375 = vmatpush1.msra.mxu0 0.0
        %1376 = vmatprep.subr.mxu0 0.0
        %1377 = vmatpush1.msra.mxu0 0.0
        %1378 = vmatprep.subr.mxu0 0.0
        %1379 = vmatpush1.msra.mxu0 %v1342
        %1380 = vmatprep.subr.mxu0 0.0
        %1381 = vmatpush1.msra.mxu0 %v1341
        %1382 = vmatprep.subr.mxu0 0.0
        %1383 = vmatpush1.msra.mxu0 %v1340
        %1384 = vmatprep.subr.mxu0 0.0
        %1385 = vmatpush1.msra.mxu0 %v1339
        %1386 = vmatprep.subr.mxu0 0.0
        %1387 = vmatpush2.msra.mxu0 0.0
        %1388 = vmatprep.subr.mxu0 0.0
        %1389 = vmatpush2.msra.mxu0 0.0
        %1390 = vmatprep.subr.mxu0 0.0
        %1391 = vmatpush2.msra.mxu0 0.0
        %1392 = vmatprep.subr.mxu0 0.0
        %1393 = vmatpush2.msra.mxu0 0.0
        %1394 = vmatprep.subr.mxu0 0.0
        %1395 = vmatpush2.msra.mxu0 0.0
        %1396 = vmatprep.subr.mxu0 0.0
        %1397 = vmatpush2.msra.mxu0 0.0
        %1398 = vmatprep.subr.mxu0 0.0
        %1399 = vmatpush2.msra.mxu0 0.0
        %1400 = vmatprep.subr.mxu0 0.0
        %1401 = vmatpush2.msra.mxu0 0.0
        %1402 = vmatprep.subr.mxu0 0.0
        %1403 = vmatpush2.msra.mxu0 0.0
        %1404 = vmatprep.subr.mxu0 0.0
        %1405 = vmatpush2.msra.mxu0 0.0
        %1406 = vmatprep.subr.mxu0 0.0
        %1407 = vmatpush2.msra.mxu0 0.0
        %1408 = vmatprep.subr.mxu0 0.0
        %1409 = vmatpush2.msra.mxu0 0.0
        %1410 = vmatprep.subr.mxu0 0.0
        %1411 = vmatpush2.msra.mxu0 0.0
        %1412 = vmatprep.subr.mxu0 0.0
        %1413 = vmatpush2.msra.mxu0 0.0
        %1414 = vmatprep.subr.mxu0 0.0
        %1415 = vmatpush2.msra.mxu0 0.0
        %1416 = vmatprep.subr.mxu0 0.0
        %1417 = vmatpush2.msra.mxu0 0.0
        %1418 = vmatprep.mubr.f32.mxu0 0.0
        %1419 = vmatmul.mubr.f32.gmra.mxu0 %v1352
        %v1420 = vpop.f32.mrf.mxu0
        %v1421 = vadd.f32 %v1348, %v1420
        %v1422 = vpop.f32.mrf.mxu0
        %1423 = vdwg.mxu0
        %v1424 = vadd.f32 %v1421, %v867
        %1425 = vst.msk [vmem:[%s640] sm:$0xff] %vm878, %v1424
      $region88: #{tpu_custom_call.1} parent=75 // pred_fallthru
        _
      %p1426 = scmp.lt.s32.totalorder %s41, 1
      %s1427 = scalar_select %p1426, %s41, 1
      %s1428 = smul.addr %s1427, 8
      %s1429 = scalar_lea.vmem %s16, %s1428
      // Predicated region
      $region89: #{tpu_custom_call.1} parent=75 // pred_check
        %p1430 = pneg %p410
      $region90: #{tpu_custom_call.1} parent=75 // pred_check_branch
        %1432 = sbr.rel (%p1430) target = $region92
      $region91: #{tpu_custom_call.1} parent=75 // pred_region
        _
      $region92: #{tpu_custom_call.1} parent=75 // pred_fallthru
        _
    $region76: #{tpu_custom_call.1} parent=5 // pred_fallthru
      _
    %p1433 = scmp.le.s32.totalorder 2, %s32
    // Predicated region
    $region93: #{tpu_custom_call.1} parent=5 // pred_check
      %p1434 = pneg %p1433
    $region94: #{tpu_custom_call.1} parent=5 // pred_check_branch
      %1436 = sbr.rel (%p1434) target = $region96
    $region95: #{tpu_custom_call.1} parent=5 // pred_region
      %s1437 = ssub.s32 %s32, 2
      // Predicated region
      $region97: #{tpu_custom_call.1} parent=95 // pred_check
        %p1438 = pneg %p416
      $region98: #{tpu_custom_call.1} parent=95 // pred_check_branch
        %1440 = sbr.rel (%p1438) target = $region100
      $region99: #{tpu_custom_call.1} parent=95 // pred_region
        %p1441 = scmp.lt.s32.totalorder %s43, 1
        %s1442 = scalar_select %p1441, %s43, 1
        %s1443 = smul.addr %s1442, 8
        %s1444 = scalar_lea.vmem %s16, %s1443
      $region100: #{tpu_custom_call.1} parent=95 // pred_fallthru
        _
    $region96: #{tpu_custom_call.1} parent=5 // pred_fallthru
      _
  $region6: #{tpu_custom_call.1} parent=0 // loop_footer
    %s36 = sadd.s32 1, %s32
  $region7: #{tpu_custom_call.1} parent=0 // loop_footer_branch
    %31 = sbr.rel target = $region3
  $region8: #{tpu_custom_call.1} parent=0 // loop_exit
    _

</llo_original>
